<compile_context>
chip_gen: v7x
topology: tpu7x:2x2x1
jax: 0.10.0
libtpu: 0.0.40
codegen_flags: <defaults>
</compile_context>

<pallas_src>
import functools

import jax
import jax.numpy as jnp
from jax.experimental import pallas as pl
from jax.experimental.pallas import tpu as pltpu

# ----------------------------------------------------------------------------
# Static layer / packing layout
# ----------------------------------------------------------------------------
LAYER_DIMS = [70, 256, 128, 64, 32, 1024, 256, 16, 1]
NUM_LAYERS = 8
NEG_SLOPE = 0.01        # nn.LeakyReLU default
DROP_P = 0.5            # nn.Dropout(0.5)
PACK_COLS = 1024        # lane width of the packed parameter blob (max out-dim)


def _pad8(n):
    return -(-n // 8) * 8


# Row offsets inside the packed (TOTAL_ROWS, PACK_COLS) bf16 parameter blob.
# Layers 0..6 stored as (in, out) at rows [_W_ROW[i], _W_ROW[i]+in), cols [0, out).
# Last layer (16 -> 1) stored transposed as a (1, 16) row (VPU epilogue).
# Bias i stored at row B_ROW + 8*i, cols [0, out_i)  (8-aligned rows).
_W_ROW = []
_off = 0
for _i in range(NUM_LAYERS - 1):
    _W_ROW.append(_off)
    _off += _pad8(LAYER_DIMS[_i])
W8_ROW = _off
_off += 8
B_ROW = _off
_off += 8 * NUM_LAYERS
TOTAL_ROWS = _off            # = 1904 rows -> ~3.9 MB bf16, VMEM-resident


def _leaky_relu(v):
    return jnp.where(v > 0, v, NEG_SLOPE * v)


def _hash_u32(x):
    """murmur-style 32-bit finalizer; uniform bits from a counter (uint32 in/out)."""
    x = x ^ (x >> 16)
    x = x * jnp.uint32(0x7FEB352D)
    x = x ^ (x >> 15)
    x = x * jnp.uint32(0x846CA68B)
    x = x ^ (x >> 16)
    return x


# ----------------------------------------------------------------------------
# Kernel
# ----------------------------------------------------------------------------
def mlp_kernel(seed_ref, x_ref, p_ref, o_ref, *, training):
    """Full SimpleNN forward on one (tile_b, 70) batch tile.

    seed_ref : SMEM scalar-prefetch (1,) int32
    x_ref    : VMEM (tile_b, 70) f32
    p_ref    : VMEM (TOTAL_ROWS, PACK_COLS) bf16 packed weights+biases (resident)
    o_ref    : VMEM (tile_b, 1) f32
    """
    # Per-program PRNG base (distinct dropout masks per batch tile / TensorCore).
    seed_u = seed_ref[0].astype(jnp.uint32)
    pid_u = pl.program_id(0).astype(jnp.uint32)
    base = seed_u * jnp.uint32(0x9E3779B9) + pid_u * jnp.uint32(0x85EBCA6B)

    def dropout(v, salt):
        rows = jax.lax.broadcasted_iota(jnp.int32, v.shape, 0).astype(jnp.uint32)
        cols = jax.lax.broadcasted_iota(jnp.int32, v.shape, 1).astype(jnp.uint32)
        salt_c = jnp.uint32((salt * 0xC2B2AE35) & 0xFFFFFFFF)
        ctr = base + salt_c + rows * jnp.uint32(PACK_COLS) + cols
        bits = _hash_u32(ctr)
        # DROP_P == 0.5: the (uniform) top bit decides -> keep prob exactly 0.5.
        keep = jax.lax.bitcast_convert_type(bits, jnp.int32) < 0
        return jnp.where(keep, v * jnp.float32(1.0 / (1.0 - DROP_P)), jnp.float32(0.0))

    def hidden_layer(h, i):
        in_d, out_d = LAYER_DIMS[i], LAYER_DIMS[i + 1]
        w = p_ref[_W_ROW[i]:_W_ROW[i] + in_d, 0:out_d]                      # bf16
        b = p_ref[B_ROW + 8 * i:B_ROW + 8 * i + 1, 0:out_d].astype(jnp.float32)
        y = jnp.dot(h.astype(jnp.bfloat16), w,
                    preferred_element_type=jnp.float32) + b
        return _leaky_relu(y)

    h = x_ref[...].astype(jnp.float32)

    h = hidden_layer(h, 0)
    if training:
        h = dropout(h, 1)
    h = hidden_layer(h, 1)
    h = hidden_layer(h, 2)
    h = hidden_layer(h, 3)
    if training:
        h = dropout(h, 2)
    h = hidden_layer(h, 4)
    h = hidden_layer(h, 5)
    h = hidden_layer(h, 6)
    if training:
        h = dropout(h, 3)

    # Final 16 -> 1 layer on VPU/XLU: broadcast-multiply + lane reduce (no MXU pass).
    w8 = p_ref[W8_ROW:W8_ROW + 1, 0:LAYER_DIMS[-2]].astype(jnp.float32)      # (1, 16)
    b8 = p_ref[B_ROW + 8 * 7:B_ROW + 8 * 7 + 1, 0:1].astype(jnp.float32)     # (1, 1)
    out = jnp.sum(h * w8, axis=-1, keepdims=True) + b8
    o_ref[...] = out.astype(o_ref.dtype)


# ----------------------------------------------------------------------------
# Wrapper
# ----------------------------------------------------------------------------
def pack_params(weights, biases):
    """Pack all weights + biases into one (TOTAL_ROWS, PACK_COLS) bf16 array."""
    p = jnp.zeros((TOTAL_ROWS, PACK_COLS), jnp.float32)
    for i in range(NUM_LAYERS - 1):
        in_d, out_d = LAYER_DIMS[i], LAYER_DIMS[i + 1]
        p = p.at[_W_ROW[i]:_W_ROW[i] + in_d, :out_d].set(weights[i])
    p = p.at[W8_ROW:W8_ROW + 1, :LAYER_DIMS[-2]].set(weights[-1].T)          # (1, 16)
    for i in range(NUM_LAYERS):
        out_d = LAYER_DIMS[i + 1]
        p = p.at[B_ROW + 8 * i, :out_d].set(biases[i].reshape(out_d))
    return p.astype(jnp.bfloat16)


def simple_nn_forward(x, packed_params, seed, *, training=True, tile_b=None):
    """x: (B, 70) f32. packed_params: (TOTAL_ROWS, PACK_COLS) bf16. seed: (1,) int32."""
    batch, in_dim = x.shape
    assert in_dim == LAYER_DIMS[0]
    if tile_b is None:
        tile_b = min(256, _pad8(batch))
    padded_b = -(-batch // tile_b) * tile_b
    if padded_b != batch:
        x = jnp.pad(x, ((0, padded_b - batch), (0, 0)))
    grid = (padded_b // tile_b,)

    flops = 2 * padded_b * sum(LAYER_DIMS[i] * LAYER_DIMS[i + 1]
                               for i in range(NUM_LAYERS))
    bytes_accessed = int(packed_params.size * 2 + x.size * 4 + padded_b * 4 + 4)

    kernel = functools.partial(mlp_kernel, training=training)

    out = pl.pallas_call(
        kernel,
        out_shape=jax.ShapeDtypeStruct((padded_b, LAYER_DIMS[-1]), jnp.float32),
        grid_spec=pltpu.PrefetchScalarGridSpec(
            num_scalar_prefetch=1,                     # seed -> SMEM
            grid=grid,
            in_specs=[
                # activations: one tile per grid step (pipelined)
                pl.BlockSpec((tile_b, LAYER_DIMS[0]), lambda i, *_: (i, 0)),
                # packed parameters: constant block index -> DMA'd once, VMEM-resident
                pl.BlockSpec((TOTAL_ROWS, PACK_COLS), lambda i, *_: (0, 0)),
            ],
            out_specs=pl.BlockSpec((tile_b, LAYER_DIMS[-1]), lambda i, *_: (i, 0)),
        ),
        compiler_params=pltpu.CompilerParams(
            dimension_semantics=("parallel",),         # batch tiles split across TCs
        ),
        cost_estimate=pl.CostEstimate(flops=flops, transcendentals=0,
                                      bytes_accessed=bytes_accessed),
    )(seed, x, packed_params)
    return out[:batch]


# ----------------------------------------------------------------------------
# Init + reference
# ----------------------------------------------------------------------------
def init_params(key):
    """PyTorch-style nn.Linear init: U(-1/sqrt(fan_in), 1/sqrt(fan_in)); W stored (in, out)."""
    weights, biases = [], []
    for i in range(NUM_LAYERS):
        fan_in, fan_out = LAYER_DIMS[i], LAYER_DIMS[i + 1]
        key, kw, kb = jax.random.split(key, 3)
        bound = 1.0 / jnp.sqrt(fan_in)
        w = jax.random.uniform(kw, (fan_in, fan_out), jnp.float32, -bound, bound)
        b = jax.random.uniform(kb, (1, fan_out), jnp.float32, -bound, bound)
        weights.append(w)
        biases.append(b)
    return weights, biases


def reference_eval(x, weights, biases):
    """Pure-JAX reference for training=False, mirroring the kernel's bf16 rounding."""
    def bf(a):
        return a.astype(jnp.bfloat16).astype(jnp.float32)

    h = x
    for i in range(NUM_LAYERS - 1):
        y = jnp.dot(bf(h), bf(weights[i])) + bf(biases[i])
        h = _leaky_relu(y)
    w8 = bf(weights[-1])                       # (16, 1)
    return jnp.sum(h * w8.T, axis=-1, keepdims=True) + bf(biases[-1])


# ----------------------------------------------------------------------------
if __name__ == "__main__":
    key = jax.random.PRNGKey(0)
    kx, kp, kb = jax.random.split(key, 3)

    weights, biases = init_params(kp)
    packed = pack_params(weights, biases)
    seed = jnp.array([1234], dtype=jnp.int32)

    # Eval path (deterministic, no dropout) — validate against pure-JAX reference.
    batch = 8
    x = jax.random.normal(kx, (batch, LAYER_DIMS[0]), jnp.float32)
    y_eval = jax.block_until_ready(simple_nn_forward(x, packed, seed, training=False))
    y_ref = reference_eval(x, weights, biases)
    assert y_eval.shape == (batch, 1)
    assert jnp.allclose(y_eval, y_ref, atol=1e-2, rtol=1e-2), "eval path mismatch"

    # Training path (in-kernel counter-hash dropout), larger batch exercises the
    # batch grid (2 tiles of 256) and per-program seeding.
    big_b = 512
    xb = jax.random.normal(kb, (big_b, LAYER_DIMS[0]), jnp.float32)
    y_train = jax.block_until_ready(simple_nn_forward(xb, packed, seed, training=True))
    assert y_train.shape == (big_b, 1)
    assert bool(jnp.all(jnp.isfinite(y_train)))

    print("KERNEL_OK")
</pallas_src>

<mosaic_0001>
module attributes {stable_mosaic.version = 11 : i64} {
  func.func @mlp_kernel(%arg0: i32, %arg1: memref<1xi32, #tpu.memory_space<smem>>, %arg2: memref<8x70xf32, #tpu.memory_space<vmem>>, %arg3: memref<1904x1024xbf16, #tpu.memory_space<vmem>>, %arg4: memref<8x1xf32, #tpu.memory_space<vmem>>) attributes {dimension_semantics = [#tpu.dimension_semantics<parallel>], iteration_bounds = array<i64: 1>, scalar_prefetch = 1 : i64, scratch_operands = 0 : i64, tpu.core_type = #tpu.core_type<tc>, window_params = [{transform_indices = @transform_0, window_bounds = array<i64: 8, 70>}, {pipeline_mode = #tpu.pipeline_mode<synchronous>, transform_indices = @transform_1, window_bounds = array<i64: 1904, 1024>}, {transform_indices = @transform_2, window_bounds = array<i64: 8, 1>}]} {
    %c0 = arith.constant 0 : index
    %c0_0 = arith.constant 0 : index
    %0 = vector.load %arg2[%c0, %c0_0] : memref<8x70xf32, #tpu.memory_space<vmem>>, vector<8x70xf32>
    %c0_1 = arith.constant 0 : index
    %c0_2 = arith.constant 0 : index
    %1 = vector.load %arg3[%c0_1, %c0_2] : memref<1904x1024xbf16, #tpu.memory_space<vmem>>, vector<70x256xbf16>
    %c1840 = arith.constant 1840 : index
    %c0_3 = arith.constant 0 : index
    %2 = vector.load %arg3[%c1840, %c0_3] : memref<1904x1024xbf16, #tpu.memory_space<vmem>>, vector<1x256xbf16>
    %3 = arith.extf %2 : vector<1x256xbf16> to vector<1x256xf32>
    %4 = arith.truncf %0 : vector<8x70xf32> to vector<8x70xbf16>
    %cst = arith.constant dense<0.000000e+00> : vector<8x256xf32>
    %5 = tpu.matmul %4, %1, %cst {dimension_numbers = #tpu.dot_dimension_numbers<[1], [0], [0], [1], [0, 0, 1, 1], [], []>} : vector<8x70xbf16>, vector<70x256xbf16>, vector<8x256xf32> -> vector<8x256xf32>
    %6 = vector.broadcast %3 : vector<1x256xf32> to vector<8x256xf32>
    %7 = arith.addf %5, %6 : vector<8x256xf32>
    %cst_4 = arith.constant 0.000000e+00 : f32
    %8 = vector.broadcast %cst_4 : f32 to vector<8x256xf32>
    %9 = arith.cmpf ogt, %7, %8 : vector<8x256xf32>
    %cst_5 = arith.constant 0.00999999977 : f32
    %10 = vector.broadcast %cst_5 : f32 to vector<8x256xf32>
    %11 = arith.mulf %10, %7 : vector<8x256xf32>
    %12 = arith.select %9, %7, %11 : vector<8x256xi1>, vector<8x256xf32>
    %c72 = arith.constant 72 : index
    %c0_6 = arith.constant 0 : index
    %13 = vector.load %arg3[%c72, %c0_6] : memref<1904x1024xbf16, #tpu.memory_space<vmem>>, vector<256x128xbf16>
    %c1848 = arith.constant 1848 : index
    %c0_7 = arith.constant 0 : index
    %14 = vector.load %arg3[%c1848, %c0_7] : memref<1904x1024xbf16, #tpu.memory_space<vmem>>, vector<1x128xbf16>
    %15 = arith.extf %14 : vector<1x128xbf16> to vector<1x128xf32>
    %16 = arith.truncf %12 : vector<8x256xf32> to vector<8x256xbf16>
    %cst_8 = arith.constant dense<0.000000e+00> : vector<8x128xf32>
    %17 = tpu.matmul %16, %13, %cst_8 {dimension_numbers = #tpu.dot_dimension_numbers<[1], [0], [0], [1], [0, 0, 1, 1], [], []>} : vector<8x256xbf16>, vector<256x128xbf16>, vector<8x128xf32> -> vector<8x128xf32>
    %18 = vector.broadcast %15 : vector<1x128xf32> to vector<8x128xf32>
    %19 = arith.addf %17, %18 : vector<8x128xf32>
    %cst_9 = arith.constant 0.000000e+00 : f32
    %20 = vector.broadcast %cst_9 : f32 to vector<8x128xf32>
    %21 = arith.cmpf ogt, %19, %20 : vector<8x128xf32>
    %cst_10 = arith.constant 0.00999999977 : f32
    %22 = vector.broadcast %cst_10 : f32 to vector<8x128xf32>
    %23 = arith.mulf %22, %19 : vector<8x128xf32>
    %24 = arith.select %21, %19, %23 : vector<8x128xi1>, vector<8x128xf32>
    %c328 = arith.constant 328 : index
    %c0_11 = arith.constant 0 : index
    %25 = vector.load %arg3[%c328, %c0_11] : memref<1904x1024xbf16, #tpu.memory_space<vmem>>, vector<128x64xbf16>
    %c1856 = arith.constant 1856 : index
    %c0_12 = arith.constant 0 : index
    %26 = vector.load %arg3[%c1856, %c0_12] : memref<1904x1024xbf16, #tpu.memory_space<vmem>>, vector<1x64xbf16>
    %27 = arith.extf %26 : vector<1x64xbf16> to vector<1x64xf32>
    %28 = arith.truncf %24 : vector<8x128xf32> to vector<8x128xbf16>
    %cst_13 = arith.constant dense<0.000000e+00> : vector<8x64xf32>
    %29 = tpu.matmul %28, %25, %cst_13 {dimension_numbers = #tpu.dot_dimension_numbers<[1], [0], [0], [1], [0, 0, 1, 1], [], []>} : vector<8x128xbf16>, vector<128x64xbf16>, vector<8x64xf32> -> vector<8x64xf32>
    %30 = vector.broadcast %27 : vector<1x64xf32> to vector<8x64xf32>
    %31 = arith.addf %29, %30 : vector<8x64xf32>
    %cst_14 = arith.constant 0.000000e+00 : f32
    %32 = vector.broadcast %cst_14 : f32 to vector<8x64xf32>
    %33 = arith.cmpf ogt, %31, %32 : vector<8x64xf32>
    %cst_15 = arith.constant 0.00999999977 : f32
    %34 = vector.broadcast %cst_15 : f32 to vector<8x64xf32>
    %35 = arith.mulf %34, %31 : vector<8x64xf32>
    %36 = arith.select %33, %31, %35 : vector<8x64xi1>, vector<8x64xf32>
    %c456 = arith.constant 456 : index
    %c0_16 = arith.constant 0 : index
    %37 = vector.load %arg3[%c456, %c0_16] : memref<1904x1024xbf16, #tpu.memory_space<vmem>>, vector<64x32xbf16>
    %c1864 = arith.constant 1864 : index
    %c0_17 = arith.constant 0 : index
    %38 = vector.load %arg3[%c1864, %c0_17] : memref<1904x1024xbf16, #tpu.memory_space<vmem>>, vector<1x32xbf16>
    %39 = arith.extf %38 : vector<1x32xbf16> to vector<1x32xf32>
    %40 = arith.truncf %36 : vector<8x64xf32> to vector<8x64xbf16>
    %cst_18 = arith.constant dense<0.000000e+00> : vector<8x32xf32>
    %41 = tpu.matmul %40, %37, %cst_18 {dimension_numbers = #tpu.dot_dimension_numbers<[1], [0], [0], [1], [0, 0, 1, 1], [], []>} : vector<8x64xbf16>, vector<64x32xbf16>, vector<8x32xf32> -> vector<8x32xf32>
    %42 = vector.broadcast %39 : vector<1x32xf32> to vector<8x32xf32>
    %43 = arith.addf %41, %42 : vector<8x32xf32>
    %cst_19 = arith.constant 0.000000e+00 : f32
    %44 = vector.broadcast %cst_19 : f32 to vector<8x32xf32>
    %45 = arith.cmpf ogt, %43, %44 : vector<8x32xf32>
    %cst_20 = arith.constant 0.00999999977 : f32
    %46 = vector.broadcast %cst_20 : f32 to vector<8x32xf32>
    %47 = arith.mulf %46, %43 : vector<8x32xf32>
    %48 = arith.select %45, %43, %47 : vector<8x32xi1>, vector<8x32xf32>
    %c520 = arith.constant 520 : index
    %c0_21 = arith.constant 0 : index
    %49 = vector.load %arg3[%c520, %c0_21] : memref<1904x1024xbf16, #tpu.memory_space<vmem>>, vector<32x1024xbf16>
    %c1872 = arith.constant 1872 : index
    %c0_22 = arith.constant 0 : index
    %50 = vector.load %arg3[%c1872, %c0_22] : memref<1904x1024xbf16, #tpu.memory_space<vmem>>, vector<1x1024xbf16>
    %51 = arith.extf %50 : vector<1x1024xbf16> to vector<1x1024xf32>
    %52 = arith.truncf %48 : vector<8x32xf32> to vector<8x32xbf16>
    %cst_23 = arith.constant dense<0.000000e+00> : vector<8x1024xf32>
    %53 = tpu.matmul %52, %49, %cst_23 {dimension_numbers = #tpu.dot_dimension_numbers<[1], [0], [0], [1], [0, 0, 1, 1], [], []>} : vector<8x32xbf16>, vector<32x1024xbf16>, vector<8x1024xf32> -> vector<8x1024xf32>
    %54 = vector.broadcast %51 : vector<1x1024xf32> to vector<8x1024xf32>
    %55 = arith.addf %53, %54 : vector<8x1024xf32>
    %cst_24 = arith.constant 0.000000e+00 : f32
    %56 = vector.broadcast %cst_24 : f32 to vector<8x1024xf32>
    %57 = arith.cmpf ogt, %55, %56 : vector<8x1024xf32>
    %cst_25 = arith.constant 0.00999999977 : f32
    %58 = vector.broadcast %cst_25 : f32 to vector<8x1024xf32>
    %59 = arith.mulf %58, %55 : vector<8x1024xf32>
    %60 = arith.select %57, %55, %59 : vector<8x1024xi1>, vector<8x1024xf32>
    %c552 = arith.constant 552 : index
    %c0_26 = arith.constant 0 : index
    %61 = vector.load %arg3[%c552, %c0_26] : memref<1904x1024xbf16, #tpu.memory_space<vmem>>, vector<1024x256xbf16>
    %c1880 = arith.constant 1880 : index
    %c0_27 = arith.constant 0 : index
    %62 = vector.load %arg3[%c1880, %c0_27] : memref<1904x1024xbf16, #tpu.memory_space<vmem>>, vector<1x256xbf16>
    %63 = arith.extf %62 : vector<1x256xbf16> to vector<1x256xf32>
    %64 = arith.truncf %60 : vector<8x1024xf32> to vector<8x1024xbf16>
    %cst_28 = arith.constant dense<0.000000e+00> : vector<8x256xf32>
    %65 = tpu.matmul %64, %61, %cst_28 {dimension_numbers = #tpu.dot_dimension_numbers<[1], [0], [0], [1], [0, 0, 1, 1], [], []>} : vector<8x1024xbf16>, vector<1024x256xbf16>, vector<8x256xf32> -> vector<8x256xf32>
    %66 = vector.broadcast %63 : vector<1x256xf32> to vector<8x256xf32>
    %67 = arith.addf %65, %66 : vector<8x256xf32>
    %cst_29 = arith.constant 0.000000e+00 : f32
    %68 = vector.broadcast %cst_29 : f32 to vector<8x256xf32>
    %69 = arith.cmpf ogt, %67, %68 : vector<8x256xf32>
    %cst_30 = arith.constant 0.00999999977 : f32
    %70 = vector.broadcast %cst_30 : f32 to vector<8x256xf32>
    %71 = arith.mulf %70, %67 : vector<8x256xf32>
    %72 = arith.select %69, %67, %71 : vector<8x256xi1>, vector<8x256xf32>
    %c1576 = arith.constant 1576 : index
    %c0_31 = arith.constant 0 : index
    %73 = vector.load %arg3[%c1576, %c0_31] : memref<1904x1024xbf16, #tpu.memory_space<vmem>>, vector<256x16xbf16>
    %c1888 = arith.constant 1888 : index
    %c0_32 = arith.constant 0 : index
    %74 = vector.load %arg3[%c1888, %c0_32] : memref<1904x1024xbf16, #tpu.memory_space<vmem>>, vector<1x16xbf16>
    %75 = arith.extf %74 : vector<1x16xbf16> to vector<1x16xf32>
    %76 = arith.truncf %72 : vector<8x256xf32> to vector<8x256xbf16>
    %cst_33 = arith.constant dense<0.000000e+00> : vector<8x16xf32>
    %77 = tpu.matmul %76, %73, %cst_33 {dimension_numbers = #tpu.dot_dimension_numbers<[1], [0], [0], [1], [0, 0, 1, 1], [], []>} : vector<8x256xbf16>, vector<256x16xbf16>, vector<8x16xf32> -> vector<8x16xf32>
    %78 = vector.broadcast %75 : vector<1x16xf32> to vector<8x16xf32>
    %79 = arith.addf %77, %78 : vector<8x16xf32>
    %cst_34 = arith.constant 0.000000e+00 : f32
    %80 = vector.broadcast %cst_34 : f32 to vector<8x16xf32>
    %81 = arith.cmpf ogt, %79, %80 : vector<8x16xf32>
    %cst_35 = arith.constant 0.00999999977 : f32
    %82 = vector.broadcast %cst_35 : f32 to vector<8x16xf32>
    %83 = arith.mulf %82, %79 : vector<8x16xf32>
    %84 = arith.select %81, %79, %83 : vector<8x16xi1>, vector<8x16xf32>
    %c1832 = arith.constant 1832 : index
    %c0_36 = arith.constant 0 : index
    %85 = vector.load %arg3[%c1832, %c0_36] : memref<1904x1024xbf16, #tpu.memory_space<vmem>>, vector<1x16xbf16>
    %86 = arith.extf %85 : vector<1x16xbf16> to vector<1x16xf32>
    %c1896 = arith.constant 1896 : index
    %c0_37 = arith.constant 0 : index
    %87 = vector.load %arg3[%c1896, %c0_37] : memref<1904x1024xbf16, #tpu.memory_space<vmem>>, vector<1x1xbf16>
    %88 = arith.extf %87 : vector<1x1xbf16> to vector<1x1xf32>
    %89 = vector.broadcast %86 : vector<1x16xf32> to vector<8x16xf32>
    %90 = arith.mulf %84, %89 : vector<8x16xf32>
    %cst_38 = arith.constant dense<0.000000e+00> : vector<8xf32>
    %91 = vector.multi_reduction <add>, %90, %cst_38 [1] : vector<8x16xf32> to vector<8xf32>
    %92 = vector.shape_cast %91 : vector<8xf32> to vector<8x1xf32>
    %93 = vector.broadcast %88 : vector<1x1xf32> to vector<8x1xf32>
    %94 = arith.addf %92, %93 : vector<8x1xf32>
    %c0_39 = arith.constant 0 : index
    %c0_40 = arith.constant 0 : index
    %95 = vector.load %arg4[%c0_39, %c0_40] : memref<8x1xf32, #tpu.memory_space<vmem>>, vector<8x1xf32>
    tpu.vector_store %arg4[%c0_39, %c0_40], %94 {strides = array<i32>} : memref<8x1xf32, #tpu.memory_space<vmem>>, vector<8x1xf32>,
    return
  }
  func.func @transform_0(%arg0: i32, %arg1: memref<1xi32, #tpu.memory_space<smem>>) -> (i32, i32) {
    %c0_i32 = arith.constant 0 : i32
    %c0_i32_0 = arith.constant 0 : i32
    return %arg0, %c0_i32 : i32, i32
  }
  func.func @transform_1(%arg0: i32, %arg1: memref<1xi32, #tpu.memory_space<smem>>) -> (i32, i32) {
    %c0_i32 = arith.constant 0 : i32
    %c0_i32_0 = arith.constant 0 : i32
    %c0_i32_1 = arith.constant 0 : i32
    return %c0_i32, %c0_i32_0 : i32, i32
  }
  func.func @transform_2(%arg0: i32, %arg1: memref<1xi32, #tpu.memory_space<smem>>) -> (i32, i32) {
    %c0_i32 = arith.constant 0 : i32
    %c0_i32_0 = arith.constant 0 : i32
    return %arg0, %c0_i32 : i32, i32
  }
}

</mosaic_0001>

<llo_original>
// kernel: tpu_custom_call.1
$region0: #{tpu_custom_call.1}
  #allocation0 [shape = 'u32[]', space=smem, size = 0x4, offset = 0x4, fixed_abs, tag = 'smem constant byte address 0x4 - core index']
  #allocation1 [shape = 'u32[144,128]{1,0:T(1,128)}', space=vmem, size = 0x12000, scoped, tag = 'internal scratch']
  #allocation2 [shape = 's32[1]{0}', space=sflag, size = 0x4, scoped, tag = 'scoped memory for tpu_custom_call.1']
  #allocation3 [shape = 's32[1]{0:T(128)S(6)}', space=smem, size = 0x200, scoped, tag = 'prefetched SMEM operand 0']
  %s0 = inlined_call_operand.<no memory space> [shape: s32[1], index: 0, kind: input, shape index: {}]
  %s1 = inlined_call_operand.hbm [shape: f32[8,70], index: 1, kind: input, shape index: {}]
  %s2 = inlined_call_operand.hbm [shape: bf16[1904,1024], index: 2, kind: input, shape index: {}]
  %s3 = inlined_call_operand.vmem [shape: f32[8,1], index: 3, kind: output, shape index: {}]
  %s4 = sld [smem:[#allocation0]]
  $region26: #{tpu_custom_call.1} parent=0
    _
  %s6 = ssub.s32 1, %s4
  %s7 = scalar_select 0, %s6, %s4
  %8 = sst [smem:[#allocation3]] %s0
  $region1: #{tpu_custom_call.1} parent=0
    #allocation4 [shape = 'u8[4096]{0}', space=vmem, size = 0x1000, scoped, tag = 'input window, operand 1, single buffered']
    #allocation5 [shape = 's32[1]{0}', space=sflag, size = 0x4, scoped, tag = 'scoped memory for tpu_custom_call.1']
    #allocation6 [shape = 'u8[3899392]{0}', space=vmem, size = 0x3b8000, scoped, tag = 'input window, operand 2, single buffered']
    #allocation7 [shape = 's32[1]{0}', space=sflag, size = 0x4, scoped, tag = 'scoped memory for tpu_custom_call.1']
    %9 = vsyncpa [#allocation5], 0
    %10 = vsyncpa [#allocation7], 0
    // Predicated region
    $region2: #{tpu_custom_call.1} parent=1 // pred_check
      _
    $region3: #{tpu_custom_call.1} parent=1 // pred_check_branch
      %12 = sbr.rel (0) target = $region5
    $region4: #{tpu_custom_call.1} parent=1 // pred_region
      %s14 = ssub.s32 128, 128
      %15 = vsyncadd [#allocation5], %s14
      %s17 = sshll.u32 [#allocation4], 4
      %s18 = int_to_ptr.vmem [resolvable:$true] %s17
      %20 = dma.hbm_to_vmem [thread:$0]  %s1, 128, %s18, [#allocation5]
    $region5: #{tpu_custom_call.1} parent=1 // pred_fallthru
      _
    // Predicated region
    $region6: #{tpu_custom_call.1} parent=1 // pred_check
      _
    $region7: #{tpu_custom_call.1} parent=1 // pred_check_branch
      %22 = sbr.rel (0) target = $region9
    $region8: #{tpu_custom_call.1} parent=1 // pred_region
      %s24 = ssub.s32 121856, 121856
      %25 = vsyncadd [#allocation7], %s24
      %s26 = sshll.u32 [#allocation6], 4
      %s27 = int_to_ptr.vmem [resolvable:$true] %s26
      %32 = dma.hbm_to_vmem [thread:$0]  %s2, 121856, %s27, [#allocation7], 512, 512, 32
    $region9: #{tpu_custom_call.1} parent=1 // pred_fallthru
      _
    // Predicated region
    $region10: #{tpu_custom_call.1} parent=1 // pred_check
      _
    $region11: #{tpu_custom_call.1} parent=1 // pred_check_branch
      %34 = sbr.rel (0) target = $region13
    $region12: #{tpu_custom_call.1} parent=1 // pred_region
      %35 = dma.done [#allocation5], 128
    $region13: #{tpu_custom_call.1} parent=1 // pred_fallthru
      _
    // Predicated region
    $region14: #{tpu_custom_call.1} parent=1 // pred_check
      _
    $region15: #{tpu_custom_call.1} parent=1 // pred_check_branch
      %37 = sbr.rel (0) target = $region17
    $region16: #{tpu_custom_call.1} parent=1 // pred_region
      %38 = dma.done [#allocation7], 121856
    $region17: #{tpu_custom_call.1} parent=1 // pred_fallthru
      _
    %v40 = vld [vmem:[#allocation4] sm:$0xff]
    %v41 = vld [vmem:[#allocation6] sm:$0xff]
    %v42 = vld [vmem:[#allocation6 + $0x20] sm:$0xff]
    %v43 = vld [vmem:[#allocation6 + $0x40] sm:$0xff]
    %v44 = vld [vmem:[#allocation6 + $0x60] sm:$0xff]
    %v45 = vld [vmem:[#allocation6 + $0x80] sm:$0xff]
    %v46 = vld [vmem:[#allocation6 + $0xa0] sm:$0xff]
    %v47 = vld [vmem:[#allocation6 + $0xc0] sm:$0xff]
    %v48 = vld [vmem:[#allocation6 + $0xe0] sm:$0xff]
    %v49 = vld [vmem:[#allocation6 + $0x100] sm:$0x77]
    %v50 = vld [vmem:[#allocation6 + $0x1cc0] sm:$0x11]
    %v51 = vunpack.c.l.bf16 %v50
    %v52 = vunpack.c.h.bf16 %v50
    %v53 = vpack.c.bf16 %v40, %v40
    %v54 = vlaneseq
    %v55 = vshrl.u32 %v54, 7
    %v56 = vsub.s32 0, %v55
    %v57 = vrot.slane %v51, %v56
    %v58 = vlaneseq
    %v59 = vshrl.u32 %v58, 7
    %v60 = vsub.s32 0, %v59
    %v61 = vrot.slane %v52, %v60
    %v71 = vunpack.c.l.b16 %v41
    %v72 = vunpack.c.h.b16 %v41
    %v73 = vunpack.c.l.b16 %v42
    %v74 = vunpack.c.h.b16 %v42
    %v75 = vunpack.c.l.b16 %v43
    %v76 = vunpack.c.h.b16 %v43
    %v77 = vunpack.c.l.b16 %v44
    %v78 = vunpack.c.h.b16 %v44
    %v79 = vunpack.c.l.b16 %v45
    %v80 = vunpack.c.h.b16 %v45
    %v81 = vunpack.c.l.b16 %v46
    %v82 = vunpack.c.h.b16 %v46
    %v83 = vunpack.c.l.b16 %v47
    %v84 = vunpack.c.h.b16 %v47
    %v85 = vunpack.c.l.b16 %v48
    %v86 = vunpack.c.h.b16 %v48
    %v87 = vunpack.c.l.b16 %v49
    %v88 = vunpack.c.h.b16 %v49
    %v89 = vpack.c.b16 %v73, %v71
    %v90 = vpack.c.b16 %v74, %v72
    %v91 = vpack.c.b16 %v77, %v75
    %v92 = vpack.c.b16 %v78, %v76
    %v93 = vpack.c.b16 %v81, %v79
    %v94 = vpack.c.b16 %v82, %v80
    %v95 = vpack.c.b16 %v85, %v83
    %v96 = vpack.c.b16 %v86, %v84
    %v97 = vpack.c.b16 %v87, %v87
    %v98 = vpack.c.b16 %v88, %v88
    %vm107 = vcmask 572416
    %v109 = vsel %vm107, %v53, 0
    %vm111 = vcmask 1042432
    %v113 = vsel %vm111, %v97, 0
    %v116 = vsel %vm111, %v98, 0
    %118 = vmatprep.subr.bf16.mxu0 %v90
    %119 = vmatpush1.bf16.msra.mxu0 %v89
    %120 = vmatprep.subr.bf16.mxu0 %v92
    %121 = vmatpush1.bf16.msra.mxu0 %v91
    %122 = vmatprep.subr.bf16.mxu0 %v94
    %123 = vmatpush1.bf16.msra.mxu0 %v93
    %124 = vmatprep.subr.bf16.mxu0 %v96
    %125 = vmatpush1.bf16.msra.mxu0 %v95
    %126 = vmatprep.subr.bf16.mxu0 %v116
    %127 = vmatpush1.bf16.msra.mxu0 %v113
    %128 = vmatprep.subr.bf16.mxu0 0
    %129 = vmatpush1.bf16.msra.mxu0 0
    %130 = vmatprep.subr.bf16.mxu0 0
    %131 = vmatpush1.bf16.msra.mxu0 0
    %132 = vmatprep.subr.bf16.mxu0 0
    %133 = vmatpush1.bf16.msra.mxu0 0
    %134 = vmatprep.subr.bf16.mxu0 0
    %135 = vmatpush1.bf16.msra.mxu0 0
    %136 = vmatprep.subr.bf16.mxu0 0
    %137 = vmatpush1.bf16.msra.mxu0 0
    %138 = vmatprep.subr.bf16.mxu0 0
    %139 = vmatpush1.bf16.msra.mxu0 0
    %140 = vmatprep.subr.bf16.mxu0 0
    %141 = vmatpush1.bf16.msra.mxu0 0
    %142 = vmatprep.subr.bf16.mxu0 0
    %143 = vmatpush1.bf16.msra.mxu0 0
    %144 = vmatprep.subr.bf16.mxu0 0
    %145 = vmatpush1.bf16.msra.mxu0 0
    %146 = vmatprep.subr.bf16.mxu0 0
    %147 = vmatpush1.bf16.msra.mxu0 0
    %148 = vmatprep.subr.bf16.mxu0 0
    %149 = vmatpush1.bf16.msra.mxu0 0
    %150 = vmatprep.mubr.bf16.mxu0 0
    %151 = vmatmul.mubr.bf16.gmra.mrb[0].mxu0 %v109
    %v152 = vpop.f32.mrb[0].mxu0
    %v153 = vadd.f32 %v57, %v152
    %v154 = vpop.f32.mrb[0].mxu0
    %v155 = vadd.f32 %v61, %v154
    %v156 = vpop.f32.mrb[0].mxu0
    %v157 = vpop.f32.mrb[0].mxu0
    %158 = vdwg.mxu0
    %vm159 = vcmp.gt.f32.partialorder %v153, 0.0
    %vm160 = vcmp.gt.f32.partialorder %v155, 0.0
    %v161 = vmul.f32 %v153, 0.01
    %v162 = vmul.f32 %v155, 0.01
    %v163 = vsel %vm159, %v153, %v161
    %v164 = vsel %vm160, %v155, %v162
    %v165 = vld [vmem:[#allocation6 + $0x120] sm:$0xf]
    %v166 = vld [vmem:[#allocation6 + $0x140] sm:$0xf]
    %v167 = vld [vmem:[#allocation6 + $0x160] sm:$0xf]
    %v168 = vld [vmem:[#allocation6 + $0x180] sm:$0xf]
    %v169 = vld [vmem:[#allocation6 + $0x1a0] sm:$0xf]
    %v170 = vld [vmem:[#allocation6 + $0x1c0] sm:$0xf]
    %v171 = vld [vmem:[#allocation6 + $0x1e0] sm:$0xf]
    %v172 = vld [vmem:[#allocation6 + $0x200] sm:$0xf]
    %v173 = vld [vmem:[#allocation6 + $0x220] sm:$0xf]
    %v174 = vld [vmem:[#allocation6 + $0x240] sm:$0xf]
    %v175 = vld [vmem:[#allocation6 + $0x260] sm:$0xf]
    %v176 = vld [vmem:[#allocation6 + $0x280] sm:$0xf]
    %v177 = vld [vmem:[#allocation6 + $0x2a0] sm:$0xf]
    %v178 = vld [vmem:[#allocation6 + $0x2c0] sm:$0xf]
    %v179 = vld [vmem:[#allocation6 + $0x2e0] sm:$0xf]
    %v180 = vld [vmem:[#allocation6 + $0x300] sm:$0xf]
    %v181 = vld [vmem:[#allocation6 + $0x320] sm:$0xf]
    %v182 = vld [vmem:[#allocation6 + $0x340] sm:$0xf]
    %v183 = vld [vmem:[#allocation6 + $0x360] sm:$0xf]
    %v184 = vld [vmem:[#allocation6 + $0x380] sm:$0xf]
    %v185 = vld [vmem:[#allocation6 + $0x3a0] sm:$0xf]
    %v186 = vld [vmem:[#allocation6 + $0x3c0] sm:$0xf]
    %v187 = vld [vmem:[#allocation6 + $0x3e0] sm:$0xf]
    %v188 = vld [vmem:[#allocation6 + $0x400] sm:$0xf]
    %v189 = vld [vmem:[#allocation6 + $0x420] sm:$0xf]
    %v190 = vld [vmem:[#allocation6 + $0x440] sm:$0xf]
    %v191 = vld [vmem:[#allocation6 + $0x460] sm:$0xf]
    %v192 = vld [vmem:[#allocation6 + $0x480] sm:$0xf]
    %v193 = vld [vmem:[#allocation6 + $0x4a0] sm:$0xf]
    %v194 = vld [vmem:[#allocation6 + $0x4c0] sm:$0xf]
    %v195 = vld [vmem:[#allocation6 + $0x4e0] sm:$0xf]
    %v196 = vld [vmem:[#allocation6 + $0x500] sm:$0xf]
    %v197 = vld [vmem:[#allocation6 + $0x1ce0] sm:$0x1]
    %v198 = vunpack.c.l.bf16 %v197
    %v199 = vpack.c.bf16 %v163, %v163
    %v200 = vpack.c.bf16 %v164, %v164
    %v201 = vlaneseq
    %v202 = vshrl.u32 %v201, 7
    %v203 = vsub.s32 0, %v202
    %v204 = vrot.slane %v198, %v203
    %v237 = vunpack.c.l.b16 %v165
    %v238 = vunpack.c.l.b16 %v166
    %v239 = vunpack.c.l.b16 %v167
    %v240 = vunpack.c.l.b16 %v168
    %v241 = vunpack.c.l.b16 %v169
    %v242 = vunpack.c.l.b16 %v170
    %v243 = vunpack.c.l.b16 %v171
    %v244 = vunpack.c.l.b16 %v172
    %v245 = vunpack.c.l.b16 %v173
    %v246 = vunpack.c.l.b16 %v174
    %v247 = vunpack.c.l.b16 %v175
    %v248 = vunpack.c.l.b16 %v176
    %v249 = vunpack.c.l.b16 %v177
    %v250 = vunpack.c.l.b16 %v178
    %v251 = vunpack.c.l.b16 %v179
    %v252 = vunpack.c.l.b16 %v180
    %v253 = vunpack.c.l.b16 %v181
    %v254 = vunpack.c.l.b16 %v182
    %v255 = vunpack.c.l.b16 %v183
    %v256 = vunpack.c.l.b16 %v184
    %v257 = vunpack.c.l.b16 %v185
    %v258 = vunpack.c.l.b16 %v186
    %v259 = vunpack.c.l.b16 %v187
    %v260 = vunpack.c.l.b16 %v188
    %v261 = vunpack.c.l.b16 %v189
    %v262 = vunpack.c.l.b16 %v190
    %v263 = vunpack.c.l.b16 %v191
    %v264 = vunpack.c.l.b16 %v192
    %v265 = vunpack.c.l.b16 %v193
    %v266 = vunpack.c.l.b16 %v194
    %v267 = vunpack.c.l.b16 %v195
    %v268 = vunpack.c.l.b16 %v196
    %v269 = vpack.c.b16 %v238, %v237
    %v270 = vpack.c.b16 %v240, %v239
    %v271 = vpack.c.b16 %v242, %v241
    %v272 = vpack.c.b16 %v244, %v243
    %v273 = vpack.c.b16 %v246, %v245
    %v274 = vpack.c.b16 %v248, %v247
    %v275 = vpack.c.b16 %v250, %v249
    %v276 = vpack.c.b16 %v252, %v251
    %v277 = vpack.c.b16 %v254, %v253
    %v278 = vpack.c.b16 %v256, %v255
    %v279 = vpack.c.b16 %v258, %v257
    %v280 = vpack.c.b16 %v260, %v259
    %v281 = vpack.c.b16 %v262, %v261
    %v282 = vpack.c.b16 %v264, %v263
    %v283 = vpack.c.b16 %v266, %v265
    %v284 = vpack.c.b16 %v268, %v267
    %301 = vmatprep.subr.bf16.mxu0 0
    %302 = vmatpush1.bf16.msra.mxu0 %v269
    %303 = vmatprep.subr.bf16.mxu0 0
    %304 = vmatpush1.bf16.msra.mxu0 %v270
    %305 = vmatprep.subr.bf16.mxu0 0
    %306 = vmatpush1.bf16.msra.mxu0 %v271
    %307 = vmatprep.subr.bf16.mxu0 0
    %308 = vmatpush1.bf16.msra.mxu0 %v272
    %309 = vmatprep.subr.bf16.mxu0 0
    %310 = vmatpush1.bf16.msra.mxu0 %v273
    %311 = vmatprep.subr.bf16.mxu0 0
    %312 = vmatpush1.bf16.msra.mxu0 %v274
    %313 = vmatprep.subr.bf16.mxu0 0
    %314 = vmatpush1.bf16.msra.mxu0 %v275
    %315 = vmatprep.subr.bf16.mxu0 0
    %316 = vmatpush1.bf16.msra.mxu0 %v276
    %317 = vmatprep.subr.bf16.mxu0 0
    %318 = vmatpush1.bf16.msra.mxu0 %v277
    %319 = vmatprep.subr.bf16.mxu0 0
    %320 = vmatpush1.bf16.msra.mxu0 %v278
    %321 = vmatprep.subr.bf16.mxu0 0
    %322 = vmatpush1.bf16.msra.mxu0 %v279
    %323 = vmatprep.subr.bf16.mxu0 0
    %324 = vmatpush1.bf16.msra.mxu0 %v280
    %325 = vmatprep.subr.bf16.mxu0 0
    %326 = vmatpush1.bf16.msra.mxu0 %v281
    %327 = vmatprep.subr.bf16.mxu0 0
    %328 = vmatpush1.bf16.msra.mxu0 %v282
    %329 = vmatprep.subr.bf16.mxu0 0
    %330 = vmatpush1.bf16.msra.mxu0 %v283
    %331 = vmatprep.subr.bf16.mxu0 0
    %332 = vmatpush1.bf16.msra.mxu0 %v284
    %333 = vmatprep.mubr.bf16.mxu0 %v200
    %334 = vmatmul.mubr.bf16.gmra.mrb[0].mxu0 %v199
    %v335 = vpop.f32.mrb[0].mxu0
    %v336 = vadd.f32 %v204, %v335
    %v337 = vpop.f32.mrb[0].mxu0
    %v338 = vpop.f32.mrb[0].mxu0
    %v339 = vpop.f32.mrb[0].mxu0
    %340 = vdwg.mxu0
    %vm341 = vcmp.gt.f32.partialorder %v336, 0.0
    %v342 = vmul.f32 %v336, 0.01
    %v343 = vsel %vm341, %v336, %v342
    %v344 = vld [vmem:[#allocation6 + $0x520] sm:$0xf]
    %v345 = vld [vmem:[#allocation6 + $0x540] sm:$0xf]
    %v346 = vld [vmem:[#allocation6 + $0x560] sm:$0xf]
    %v347 = vld [vmem:[#allocation6 + $0x580] sm:$0xf]
    %v348 = vld [vmem:[#allocation6 + $0x5a0] sm:$0xf]
    %v349 = vld [vmem:[#allocation6 + $0x5c0] sm:$0xf]
    %v350 = vld [vmem:[#allocation6 + $0x5e0] sm:$0xf]
    %v351 = vld [vmem:[#allocation6 + $0x600] sm:$0xf]
    %v352 = vld [vmem:[#allocation6 + $0x620] sm:$0xf]
    %v353 = vld [vmem:[#allocation6 + $0x640] sm:$0xf]
    %v354 = vld [vmem:[#allocation6 + $0x660] sm:$0xf]
    %v355 = vld [vmem:[#allocation6 + $0x680] sm:$0xf]
    %v356 = vld [vmem:[#allocation6 + $0x6a0] sm:$0xf]
    %v357 = vld [vmem:[#allocation6 + $0x6c0] sm:$0xf]
    %v358 = vld [vmem:[#allocation6 + $0x6e0] sm:$0xf]
    %v359 = vld [vmem:[#allocation6 + $0x700] sm:$0xf]
    %v360 = vld [vmem:[#allocation6 + $0x1d00] sm:$0x1]
    %v361 = vunpack.c.l.bf16 %v360
    %v362 = vpack.c.bf16 %v343, %v343
    %v363 = vlaneseq
    %v364 = vshrl.u32 %v363, 7
    %v365 = vsub.s32 0, %v364
    %v366 = vrot.slane %v361, %v365
    %v383 = vunpack.c.l.b16 %v344
    %v384 = vunpack.c.l.b16 %v345
    %v385 = vunpack.c.l.b16 %v346
    %v386 = vunpack.c.l.b16 %v347
    %v387 = vunpack.c.l.b16 %v348
    %v388 = vunpack.c.l.b16 %v349
    %v389 = vunpack.c.l.b16 %v350
    %v390 = vunpack.c.l.b16 %v351
    %v391 = vunpack.c.l.b16 %v352
    %v392 = vunpack.c.l.b16 %v353
    %v393 = vunpack.c.l.b16 %v354
    %v394 = vunpack.c.l.b16 %v355
    %v395 = vunpack.c.l.b16 %v356
    %v396 = vunpack.c.l.b16 %v357
    %v397 = vunpack.c.l.b16 %v358
    %v398 = vunpack.c.l.b16 %v359
    %v399 = vpack.c.b16 %v384, %v383
    %v400 = vpack.c.b16 %v386, %v385
    %v401 = vpack.c.b16 %v388, %v387
    %v402 = vpack.c.b16 %v390, %v389
    %v403 = vpack.c.b16 %v392, %v391
    %v404 = vpack.c.b16 %v394, %v393
    %v405 = vpack.c.b16 %v396, %v395
    %v406 = vpack.c.b16 %v398, %v397
    %415 = vmatprep.subr.bf16.mxu0 0
    %416 = vmatpush1.bf16.msra.mxu0 %v399
    %417 = vmatprep.subr.bf16.mxu0 0
    %418 = vmatpush1.bf16.msra.mxu0 %v400
    %419 = vmatprep.subr.bf16.mxu0 0
    %420 = vmatpush1.bf16.msra.mxu0 %v401
    %421 = vmatprep.subr.bf16.mxu0 0
    %422 = vmatpush1.bf16.msra.mxu0 %v402
    %423 = vmatprep.subr.bf16.mxu0 0
    %424 = vmatpush1.bf16.msra.mxu0 %v403
    %425 = vmatprep.subr.bf16.mxu0 0
    %426 = vmatpush1.bf16.msra.mxu0 %v404
    %427 = vmatprep.subr.bf16.mxu0 0
    %428 = vmatpush1.bf16.msra.mxu0 %v405
    %429 = vmatprep.subr.bf16.mxu0 0
    %430 = vmatpush1.bf16.msra.mxu0 %v406
    %431 = vmatprep.subr.bf16.mxu0 0
    %432 = vmatpush1.bf16.msra.mxu0 0
    %433 = vmatprep.subr.bf16.mxu0 0
    %434 = vmatpush1.bf16.msra.mxu0 0
    %435 = vmatprep.subr.bf16.mxu0 0
    %436 = vmatpush1.bf16.msra.mxu0 0
    %437 = vmatprep.subr.bf16.mxu0 0
    %438 = vmatpush1.bf16.msra.mxu0 0
    %439 = vmatprep.subr.bf16.mxu0 0
    %440 = vmatpush1.bf16.msra.mxu0 0
    %441 = vmatprep.subr.bf16.mxu0 0
    %442 = vmatpush1.bf16.msra.mxu0 0
    %443 = vmatprep.subr.bf16.mxu0 0
    %444 = vmatpush1.bf16.msra.mxu0 0
    %445 = vmatprep.subr.bf16.mxu0 0
    %446 = vmatpush1.bf16.msra.mxu0 0
    %447 = vmatprep.mubr.bf16.mxu0 0
    %448 = vmatmul.mubr.bf16.gmra.mrb[0].mxu0 %v362
    %v449 = vpop.f32.mrb[0].mxu0
    %v450 = vadd.f32 %v366, %v449
    %v451 = vpop.f32.mrb[0].mxu0
    %v452 = vpop.f32.mrb[0].mxu0
    %v453 = vpop.f32.mrb[0].mxu0
    %454 = vdwg.mxu0
    %vm455 = vcmp.gt.f32.partialorder %v450, 0.0
    %v456 = vmul.f32 %v450, 0.01
    %v457 = vsel %vm455, %v450, %v456
    %v458 = vld [vmem:[#allocation6 + $0x720] sm:$0xf]
    %v459 = vld [vmem:[#allocation6 + $0x740] sm:$0xf]
    %v460 = vld [vmem:[#allocation6 + $0x760] sm:$0xf]
    %v461 = vld [vmem:[#allocation6 + $0x780] sm:$0xf]
    %v462 = vld [vmem:[#allocation6 + $0x7a0] sm:$0xf]
    %v463 = vld [vmem:[#allocation6 + $0x7c0] sm:$0xf]
    %v464 = vld [vmem:[#allocation6 + $0x7e0] sm:$0xf]
    %v465 = vld [vmem:[#allocation6 + $0x800] sm:$0xf]
    %v466 = vld [vmem:[#allocation6 + $0x1d20] sm:$0x1]
    %v467 = vunpack.c.l.bf16 %v466
    %v468 = vpack.c.bf16 %v457, %v457
    %v469 = vlaneseq
    %v470 = vshrl.u32 %v469, 7
    %v471 = vsub.s32 0, %v470
    %v472 = vrot.slane %v467, %v471
    %v481 = vunpack.c.l.b16 %v458
    %v482 = vunpack.c.l.b16 %v459
    %v483 = vunpack.c.l.b16 %v460
    %v484 = vunpack.c.l.b16 %v461
    %v485 = vunpack.c.l.b16 %v462
    %v486 = vunpack.c.l.b16 %v463
    %v487 = vunpack.c.l.b16 %v464
    %v488 = vunpack.c.l.b16 %v465
    %v489 = vpack.c.b16 %v482, %v481
    %v490 = vpack.c.b16 %v484, %v483
    %v491 = vpack.c.b16 %v486, %v485
    %v492 = vpack.c.b16 %v488, %v487
    %vm497 = vcmask 523264
    %v499 = vsel %vm497, %v468, 0
    %501 = vmatprep.subr.bf16.mxu0 0
    %502 = vmatpush1.bf16.msra.mxu0 %v489
    %503 = vmatprep.subr.bf16.mxu0 0
    %504 = vmatpush1.bf16.msra.mxu0 %v490
    %505 = vmatprep.subr.bf16.mxu0 0
    %506 = vmatpush1.bf16.msra.mxu0 %v491
    %507 = vmatprep.subr.bf16.mxu0 0
    %508 = vmatpush1.bf16.msra.mxu0 %v492
    %509 = vmatprep.subr.bf16.mxu0 0
    %510 = vmatpush1.bf16.msra.mxu0 0
    %511 = vmatprep.subr.bf16.mxu0 0
    %512 = vmatpush1.bf16.msra.mxu0 0
    %513 = vmatprep.subr.bf16.mxu0 0
    %514 = vmatpush1.bf16.msra.mxu0 0
    %515 = vmatprep.subr.bf16.mxu0 0
    %516 = vmatpush1.bf16.msra.mxu0 0
    %517 = vmatprep.subr.bf16.mxu0 0
    %518 = vmatpush1.bf16.msra.mxu0 0
    %519 = vmatprep.subr.bf16.mxu0 0
    %520 = vmatpush1.bf16.msra.mxu0 0
    %521 = vmatprep.subr.bf16.mxu0 0
    %522 = vmatpush1.bf16.msra.mxu0 0
    %523 = vmatprep.subr.bf16.mxu0 0
    %524 = vmatpush1.bf16.msra.mxu0 0
    %525 = vmatprep.subr.bf16.mxu0 0
    %526 = vmatpush1.bf16.msra.mxu0 0
    %527 = vmatprep.subr.bf16.mxu0 0
    %528 = vmatpush1.bf16.msra.mxu0 0
    %529 = vmatprep.subr.bf16.mxu0 0
    %530 = vmatpush1.bf16.msra.mxu0 0
    %531 = vmatprep.subr.bf16.mxu0 0
    %532 = vmatpush1.bf16.msra.mxu0 0
    %533 = vmatprep.mubr.bf16.mxu0 0
    %534 = vmatmul.mubr.bf16.gmra.mrb[0].mxu0 %v499
    %v535 = vpop.f32.mrb[0].mxu0
    %v536 = vadd.f32 %v472, %v535
    %v537 = vpop.f32.mrb[0].mxu0
    %v538 = vpop.f32.mrb[0].mxu0
    %v539 = vpop.f32.mrb[0].mxu0
    %540 = vdwg.mxu0
    %vm541 = vcmp.gt.f32.partialorder %v536, 0.0
    %v542 = vmul.f32 %v536, 0.01
    %v543 = vsel %vm541, %v536, %v542
    %v544 = vld [vmem:[#allocation6 + $0x820] sm:$0xff]
    %v545 = vld [vmem:[#allocation6 + $0x828] sm:$0xff]
    %v546 = vld [vmem:[#allocation6 + $0x830] sm:$0xff]
    %v547 = vld [vmem:[#allocation6 + $0x838] sm:$0xff]
    %v548 = vld [vmem:[#allocation6 + $0x840] sm:$0xff]
    %v549 = vld [vmem:[#allocation6 + $0x848] sm:$0xff]
    %v550 = vld [vmem:[#allocation6 + $0x850] sm:$0xff]
    %v551 = vld [vmem:[#allocation6 + $0x858] sm:$0xff]
    %v552 = vld [vmem:[#allocation6 + $0x860] sm:$0xff]
    %v553 = vld [vmem:[#allocation6 + $0x868] sm:$0xff]
    %v554 = vld [vmem:[#allocation6 + $0x870] sm:$0xff]
    %v555 = vld [vmem:[#allocation6 + $0x878] sm:$0xff]
    %v556 = vld [vmem:[#allocation6 + $0x880] sm:$0xff]
    %v557 = vld [vmem:[#allocation6 + $0x888] sm:$0xff]
    %v558 = vld [vmem:[#allocation6 + $0x890] sm:$0xff]
    %v559 = vld [vmem:[#allocation6 + $0x898] sm:$0xff]
    %v560 = vld [vmem:[#allocation6 + $0x1d40] sm:$0x11]
    %v561 = vld [vmem:[#allocation6 + $0x1d48] sm:$0x11]
    %v562 = vld [vmem:[#allocation6 + $0x1d50] sm:$0x11]
    %v563 = vld [vmem:[#allocation6 + $0x1d58] sm:$0x11]
    %v564 = vunpack.c.l.bf16 %v560
    %v565 = vunpack.c.h.bf16 %v560
    %v566 = vunpack.c.l.bf16 %v561
    %v567 = vunpack.c.h.bf16 %v561
    %v568 = vunpack.c.l.bf16 %v562
    %v569 = vunpack.c.h.bf16 %v562
    %v570 = vunpack.c.l.bf16 %v563
    %v571 = vunpack.c.h.bf16 %v563
    %v572 = vpack.c.bf16 %v543, %v543
    %v573 = vlaneseq
    %v574 = vshrl.u32 %v573, 7
    %v575 = vsub.s32 0, %v574
    %v576 = vrot.slane %v564, %v575
    %v577 = vlaneseq
    %v578 = vshrl.u32 %v577, 7
    %v579 = vsub.s32 0, %v578
    %v580 = vrot.slane %v565, %v579
    %v581 = vlaneseq
    %v582 = vshrl.u32 %v581, 7
    %v583 = vsub.s32 0, %v582
    %v584 = vrot.slane %v566, %v583
    %v585 = vlaneseq
    %v586 = vshrl.u32 %v585, 7
    %v587 = vsub.s32 0, %v586
    %v588 = vrot.slane %v567, %v587
    %v589 = vlaneseq
    %v590 = vshrl.u32 %v589, 7
    %v591 = vsub.s32 0, %v590
    %v592 = vrot.slane %v568, %v591
    %v593 = vlaneseq
    %v594 = vshrl.u32 %v593, 7
    %v595 = vsub.s32 0, %v594
    %v596 = vrot.slane %v569, %v595
    %v597 = vlaneseq
    %v598 = vshrl.u32 %v597, 7
    %v599 = vsub.s32 0, %v598
    %v600 = vrot.slane %v570, %v599
    %v601 = vlaneseq
    %v602 = vshrl.u32 %v601, 7
    %v603 = vsub.s32 0, %v602
    %v604 = vrot.slane %v571, %v603
    %v621 = vunpack.c.l.b16 %v544
    %v622 = vunpack.c.h.b16 %v544
    %v623 = vunpack.c.l.b16 %v545
    %v624 = vunpack.c.h.b16 %v545
    %v625 = vunpack.c.l.b16 %v546
    %v626 = vunpack.c.h.b16 %v546
    %v627 = vunpack.c.l.b16 %v547
    %v628 = vunpack.c.h.b16 %v547
    %v629 = vunpack.c.l.b16 %v548
    %v630 = vunpack.c.h.b16 %v548
    %v631 = vunpack.c.l.b16 %v549
    %v632 = vunpack.c.h.b16 %v549
    %v633 = vunpack.c.l.b16 %v550
    %v634 = vunpack.c.h.b16 %v550
    %v635 = vunpack.c.l.b16 %v551
    %v636 = vunpack.c.h.b16 %v551
    %v637 = vunpack.c.l.b16 %v552
    %v638 = vunpack.c.h.b16 %v552
    %v639 = vunpack.c.l.b16 %v553
    %v640 = vunpack.c.h.b16 %v553
    %v641 = vunpack.c.l.b16 %v554
    %v642 = vunpack.c.h.b16 %v554
    %v643 = vunpack.c.l.b16 %v555
    %v644 = vunpack.c.h.b16 %v555
    %v645 = vunpack.c.l.b16 %v556
    %v646 = vunpack.c.h.b16 %v556
    %v647 = vunpack.c.l.b16 %v557
    %v648 = vunpack.c.h.b16 %v557
    %v649 = vunpack.c.l.b16 %v558
    %v650 = vunpack.c.h.b16 %v558
    %v651 = vunpack.c.l.b16 %v559
    %v652 = vunpack.c.h.b16 %v559
    %v653 = vpack.c.b16 %v629, %v621
    %v654 = vpack.c.b16 %v630, %v622
    %v655 = vpack.c.b16 %v631, %v623
    %v656 = vpack.c.b16 %v632, %v624
    %v657 = vpack.c.b16 %v633, %v625
    %v658 = vpack.c.b16 %v634, %v626
    %v659 = vpack.c.b16 %v635, %v627
    %v660 = vpack.c.b16 %v636, %v628
    %v661 = vpack.c.b16 %v645, %v637
    %v662 = vpack.c.b16 %v646, %v638
    %v663 = vpack.c.b16 %v647, %v639
    %v664 = vpack.c.b16 %v648, %v640
    %v665 = vpack.c.b16 %v649, %v641
    %v666 = vpack.c.b16 %v650, %v642
    %v667 = vpack.c.b16 %v651, %v643
    %v668 = vpack.c.b16 %v652, %v644
    %vm685 = vcmask 261120
    %v687 = vsel %vm685, %v572, 0
    %689 = vmatprep.subr.bf16.mxu0 %v654
    %690 = vmatpush1.bf16.msra.mxu0 %v653
    %691 = vmatprep.subr.bf16.mxu0 %v662
    %692 = vmatpush1.bf16.msra.mxu0 %v661
    %693 = vmatprep.subr.bf16.mxu0 0
    %694 = vmatpush1.bf16.msra.mxu0 0
    %695 = vmatprep.subr.bf16.mxu0 0
    %696 = vmatpush1.bf16.msra.mxu0 0
    %697 = vmatprep.subr.bf16.mxu0 0
    %698 = vmatpush1.bf16.msra.mxu0 0
    %699 = vmatprep.subr.bf16.mxu0 0
    %700 = vmatpush1.bf16.msra.mxu0 0
    %701 = vmatprep.subr.bf16.mxu0 0
    %702 = vmatpush1.bf16.msra.mxu0 0
    %703 = vmatprep.subr.bf16.mxu0 0
    %704 = vmatpush1.bf16.msra.mxu0 0
    %705 = vmatprep.subr.bf16.mxu0 0
    %706 = vmatpush1.bf16.msra.mxu0 0
    %707 = vmatprep.subr.bf16.mxu0 0
    %708 = vmatpush1.bf16.msra.mxu0 0
    %709 = vmatprep.subr.bf16.mxu0 0
    %710 = vmatpush1.bf16.msra.mxu0 0
    %711 = vmatprep.subr.bf16.mxu0 0
    %712 = vmatpush1.bf16.msra.mxu0 0
    %713 = vmatprep.subr.bf16.mxu0 0
    %714 = vmatpush1.bf16.msra.mxu0 0
    %715 = vmatprep.subr.bf16.mxu0 0
    %716 = vmatpush1.bf16.msra.mxu0 0
    %717 = vmatprep.subr.bf16.mxu0 0
    %718 = vmatpush1.bf16.msra.mxu0 0
    %719 = vmatprep.subr.bf16.mxu0 0
    %720 = vmatpush1.bf16.msra.mxu0 0
    %721 = vmatprep.mubr.bf16.mxu0 0
    %722 = vmatmul.mubr.bf16.gmra.mrb[0].mxu0 %v687
    %v723 = vpop.f32.mrb[0].mxu0
    %v724 = vadd.f32 %v576, %v723
    %v725 = vpop.f32.mrb[0].mxu0
    %v726 = vadd.f32 %v580, %v725
    %v727 = vpop.f32.mrb[0].mxu0
    %v728 = vpop.f32.mrb[0].mxu0
    %729 = vdwg.mxu0
    %730 = vmatprep.subr.bf16.mxu0 %v656
    %731 = vmatpush1.bf16.msra.mxu0 %v655
    %732 = vmatprep.subr.bf16.mxu0 %v664
    %733 = vmatpush1.bf16.msra.mxu0 %v663
    %734 = vmatprep.subr.bf16.mxu0 0
    %735 = vmatpush1.bf16.msra.mxu0 0
    %736 = vmatprep.subr.bf16.mxu0 0
    %737 = vmatpush1.bf16.msra.mxu0 0
    %738 = vmatprep.subr.bf16.mxu0 0
    %739 = vmatpush1.bf16.msra.mxu0 0
    %740 = vmatprep.subr.bf16.mxu0 0
    %741 = vmatpush1.bf16.msra.mxu0 0
    %742 = vmatprep.subr.bf16.mxu0 0
    %743 = vmatpush1.bf16.msra.mxu0 0
    %744 = vmatprep.subr.bf16.mxu0 0
    %745 = vmatpush1.bf16.msra.mxu0 0
    %746 = vmatprep.subr.bf16.mxu0 0
    %747 = vmatpush1.bf16.msra.mxu0 0
    %748 = vmatprep.subr.bf16.mxu0 0
    %749 = vmatpush1.bf16.msra.mxu0 0
    %750 = vmatprep.subr.bf16.mxu0 0
    %751 = vmatpush1.bf16.msra.mxu0 0
    %752 = vmatprep.subr.bf16.mxu0 0
    %753 = vmatpush1.bf16.msra.mxu0 0
    %754 = vmatprep.subr.bf16.mxu0 0
    %755 = vmatpush1.bf16.msra.mxu0 0
    %756 = vmatprep.subr.bf16.mxu0 0
    %757 = vmatpush1.bf16.msra.mxu0 0
    %758 = vmatprep.subr.bf16.mxu0 0
    %759 = vmatpush1.bf16.msra.mxu0 0
    %760 = vmatprep.subr.bf16.mxu0 0
    %761 = vmatpush1.bf16.msra.mxu0 0
    %762 = vmatprep.mubr.bf16.mxu0 0
    %763 = vmatmul.mubr.bf16.gmra.mrb[0].mxu0 %v687
    %v764 = vpop.f32.mrb[0].mxu0
    %v765 = vadd.f32 %v584, %v764
    %v766 = vpop.f32.mrb[0].mxu0
    %v767 = vadd.f32 %v588, %v766
    %v768 = vpop.f32.mrb[0].mxu0
    %v769 = vpop.f32.mrb[0].mxu0
    %770 = vdwg.mxu0
    %771 = vmatprep.subr.bf16.mxu0 %v658
    %772 = vmatpush1.bf16.msra.mxu0 %v657
    %773 = vmatprep.subr.bf16.mxu0 %v666
    %774 = vmatpush1.bf16.msra.mxu0 %v665
    %775 = vmatprep.subr.bf16.mxu0 0
    %776 = vmatpush1.bf16.msra.mxu0 0
    %777 = vmatprep.subr.bf16.mxu0 0
    %778 = vmatpush1.bf16.msra.mxu0 0
    %779 = vmatprep.subr.bf16.mxu0 0
    %780 = vmatpush1.bf16.msra.mxu0 0
    %781 = vmatprep.subr.bf16.mxu0 0
    %782 = vmatpush1.bf16.msra.mxu0 0
    %783 = vmatprep.subr.bf16.mxu0 0
    %784 = vmatpush1.bf16.msra.mxu0 0
    %785 = vmatprep.subr.bf16.mxu0 0
    %786 = vmatpush1.bf16.msra.mxu0 0
    %787 = vmatprep.subr.bf16.mxu0 0
    %788 = vmatpush1.bf16.msra.mxu0 0
    %789 = vmatprep.subr.bf16.mxu0 0
    %790 = vmatpush1.bf16.msra.mxu0 0
    %791 = vmatprep.subr.bf16.mxu0 0
    %792 = vmatpush1.bf16.msra.mxu0 0
    %793 = vmatprep.subr.bf16.mxu0 0
    %794 = vmatpush1.bf16.msra.mxu0 0
    %795 = vmatprep.subr.bf16.mxu0 0
    %796 = vmatpush1.bf16.msra.mxu0 0
    %797 = vmatprep.subr.bf16.mxu0 0
    %798 = vmatpush1.bf16.msra.mxu0 0
    %799 = vmatprep.subr.bf16.mxu0 0
    %800 = vmatpush1.bf16.msra.mxu0 0
    %801 = vmatprep.subr.bf16.mxu0 0
    %802 = vmatpush1.bf16.msra.mxu0 0
    %803 = vmatprep.mubr.bf16.mxu0 0
    %804 = vmatmul.mubr.bf16.gmra.mrb[0].mxu0 %v687
    %v805 = vpop.f32.mrb[0].mxu0
    %v806 = vadd.f32 %v592, %v805
    %v807 = vpop.f32.mrb[0].mxu0
    %v808 = vadd.f32 %v596, %v807
    %v809 = vpop.f32.mrb[0].mxu0
    %v810 = vpop.f32.mrb[0].mxu0
    %811 = vdwg.mxu0
    %812 = vmatprep.subr.bf16.mxu0 %v660
    %813 = vmatpush1.bf16.msra.mxu0 %v659
    %814 = vmatprep.subr.bf16.mxu0 %v668
    %815 = vmatpush1.bf16.msra.mxu0 %v667
    %816 = vmatprep.subr.bf16.mxu0 0
    %817 = vmatpush1.bf16.msra.mxu0 0
    %818 = vmatprep.subr.bf16.mxu0 0
    %819 = vmatpush1.bf16.msra.mxu0 0
    %820 = vmatprep.subr.bf16.mxu0 0
    %821 = vmatpush1.bf16.msra.mxu0 0
    %822 = vmatprep.subr.bf16.mxu0 0
    %823 = vmatpush1.bf16.msra.mxu0 0
    %824 = vmatprep.subr.bf16.mxu0 0
    %825 = vmatpush1.bf16.msra.mxu0 0
    %826 = vmatprep.subr.bf16.mxu0 0
    %827 = vmatpush1.bf16.msra.mxu0 0
    %828 = vmatprep.subr.bf16.mxu0 0
    %829 = vmatpush1.bf16.msra.mxu0 0
    %830 = vmatprep.subr.bf16.mxu0 0
    %831 = vmatpush1.bf16.msra.mxu0 0
    %832 = vmatprep.subr.bf16.mxu0 0
    %833 = vmatpush1.bf16.msra.mxu0 0
    %834 = vmatprep.subr.bf16.mxu0 0
    %835 = vmatpush1.bf16.msra.mxu0 0
    %836 = vmatprep.subr.bf16.mxu0 0
    %837 = vmatpush1.bf16.msra.mxu0 0
    %838 = vmatprep.subr.bf16.mxu0 0
    %839 = vmatpush1.bf16.msra.mxu0 0
    %840 = vmatprep.subr.bf16.mxu0 0
    %841 = vmatpush1.bf16.msra.mxu0 0
    %842 = vmatprep.subr.bf16.mxu0 0
    %843 = vmatpush1.bf16.msra.mxu0 0
    %844 = vmatprep.mubr.bf16.mxu0 0
    %845 = vmatmul.mubr.bf16.gmra.mrb[0].mxu0 %v687
    %v846 = vpop.f32.mrb[0].mxu0
    %v847 = vadd.f32 %v600, %v846
    %v848 = vpop.f32.mrb[0].mxu0
    %v849 = vadd.f32 %v604, %v848
    %v850 = vpop.f32.mrb[0].mxu0
    %v851 = vpop.f32.mrb[0].mxu0
    %852 = vdwg.mxu0
    %vm853 = vcmp.gt.f32.partialorder %v724, 0.0
    %vm854 = vcmp.gt.f32.partialorder %v726, 0.0
    %vm855 = vcmp.gt.f32.partialorder %v765, 0.0
    %vm856 = vcmp.gt.f32.partialorder %v767, 0.0
    %vm857 = vcmp.gt.f32.partialorder %v806, 0.0
    %vm858 = vcmp.gt.f32.partialorder %v808, 0.0
    %vm859 = vcmp.gt.f32.partialorder %v847, 0.0
    %vm860 = vcmp.gt.f32.partialorder %v849, 0.0
    %v861 = vmul.f32 %v724, 0.01
    %v862 = vmul.f32 %v726, 0.01
    %v863 = vmul.f32 %v765, 0.01
    %v864 = vmul.f32 %v767, 0.01
    %v865 = vmul.f32 %v806, 0.01
    %v866 = vmul.f32 %v808, 0.01
    %v867 = vmul.f32 %v847, 0.01
    %v868 = vmul.f32 %v849, 0.01
    %v869 = vsel %vm853, %v724, %v861
    %v870 = vsel %vm854, %v726, %v862
    %v871 = vsel %vm855, %v765, %v863
    %v872 = vsel %vm856, %v767, %v864
    %v873 = vsel %vm857, %v806, %v865
    %v874 = vsel %vm858, %v808, %v866
    %v875 = vsel %vm859, %v847, %v867
    %v876 = vsel %vm860, %v849, %v868
    %v877 = vld [vmem:[#allocation6 + $0x8a0] sm:$0xff]
    %v878 = vld [vmem:[#allocation6 + $0x8c0] sm:$0xff]
    %v879 = vld [vmem:[#allocation6 + $0x8e0] sm:$0xff]
    %v880 = vld [vmem:[#allocation6 + $0x900] sm:$0xff]
    %v881 = vld [vmem:[#allocation6 + $0x920] sm:$0xff]
    %v882 = vld [vmem:[#allocation6 + $0x940] sm:$0xff]
    %v883 = vld [vmem:[#allocation6 + $0x960] sm:$0xff]
    %v884 = vld [vmem:[#allocation6 + $0x980] sm:$0xff]
    %v885 = vld [vmem:[#allocation6 + $0x9a0] sm:$0xff]
    %v886 = vld [vmem:[#allocation6 + $0x9c0] sm:$0xff]
    %v887 = vld [vmem:[#allocation6 + $0x9e0] sm:$0xff]
    %v888 = vld [vmem:[#allocation6 + $0xa00] sm:$0xff]
    %v889 = vld [vmem:[#allocation6 + $0xa20] sm:$0xff]
    %v890 = vld [vmem:[#allocation6 + $0xa40] sm:$0xff]
    %v891 = vld [vmem:[#allocation6 + $0xa60] sm:$0xff]
    %v892 = vld [vmem:[#allocation6 + $0xa80] sm:$0xff]
    %v893 = vld [vmem:[#allocation6 + $0xaa0] sm:$0xff]
    %v894 = vld [vmem:[#allocation6 + $0xac0] sm:$0xff]
    %v895 = vld [vmem:[#allocation6 + $0xae0] sm:$0xff]
    %v896 = vld [vmem:[#allocation6 + $0xb00] sm:$0xff]
    %v897 = vld [vmem:[#allocation6 + $0xb20] sm:$0xff]
    %v898 = vld [vmem:[#allocation6 + $0xb40] sm:$0xff]
    %v899 = vld [vmem:[#allocation6 + $0xb60] sm:$0xff]
    %v900 = vld [vmem:[#allocation6 + $0xb80] sm:$0xff]
    %v901 = vld [vmem:[#allocation6 + $0xba0] sm:$0xff]
    %v902 = vld [vmem:[#allocation6 + $0xbc0] sm:$0xff]
    %v903 = vld [vmem:[#allocation6 + $0xbe0] sm:$0xff]
    %v904 = vld [vmem:[#allocation6 + $0xc00] sm:$0xff]
    %v905 = vld [vmem:[#allocation6 + $0xc20] sm:$0xff]
    %v906 = vld [vmem:[#allocation6 + $0xc40] sm:$0xff]
    %v907 = vld [vmem:[#allocation6 + $0xc60] sm:$0xff]
    %v908 = vld [vmem:[#allocation6 + $0xc80] sm:$0xff]
    %v909 = vld [vmem:[#allocation6 + $0xca0] sm:$0xff]
    %v910 = vld [vmem:[#allocation6 + $0xcc0] sm:$0xff]
    %v911 = vld [vmem:[#allocation6 + $0xce0] sm:$0xff]
    %v912 = vld [vmem:[#allocation6 + $0xd00] sm:$0xff]
    %v913 = vld [vmem:[#allocation6 + $0xd20] sm:$0xff]
    %v914 = vld [vmem:[#allocation6 + $0xd40] sm:$0xff]
    %v915 = vld [vmem:[#allocation6 + $0xd60] sm:$0xff]
    %v916 = vld [vmem:[#allocation6 + $0xd80] sm:$0xff]
    %v917 = vld [vmem:[#allocation6 + $0xda0] sm:$0xff]
    %v918 = vld [vmem:[#allocation6 + $0xdc0] sm:$0xff]
    %v919 = vld [vmem:[#allocation6 + $0xde0] sm:$0xff]
    %v920 = vld [vmem:[#allocation6 + $0xe00] sm:$0xff]
    %v921 = vld [vmem:[#allocation6 + $0xe20] sm:$0xff]
    %v922 = vld [vmem:[#allocation6 + $0xe40] sm:$0xff]
    %v923 = vld [vmem:[#allocation6 + $0xe60] sm:$0xff]
    %v924 = vld [vmem:[#allocation6 + $0xe80] sm:$0xff]
    %v925 = vld [vmem:[#allocation6 + $0xea0] sm:$0xff]
    %v926 = vld [vmem:[#allocation6 + $0xec0] sm:$0xff]
    %v927 = vld [vmem:[#allocation6 + $0xee0] sm:$0xff]
    %v928 = vld [vmem:[#allocation6 + $0xf00] sm:$0xff]
    %v929 = vld [vmem:[#allocation6 + $0xf20] sm:$0xff]
    %v930 = vld [vmem:[#allocation6 + $0xf40] sm:$0xff]
    %v931 = vld [vmem:[#allocation6 + $0xf60] sm:$0xff]
    %v932 = vld [vmem:[#allocation6 + $0xf80] sm:$0xff]
    %v933 = vld [vmem:[#allocation6 + $0xfa0] sm:$0xff]
    %v934 = vld [vmem:[#allocation6 + $0xfc0] sm:$0xff]
    %v935 = vld [vmem:[#allocation6 + $0xfe0] sm:$0xff]
    %v936 = vld [vmem:[#allocation6 + $0x1000] sm:$0xff]
    %v937 = vld [vmem:[#allocation6 + $0x1020] sm:$0xff]
    %v938 = vld [vmem:[#allocation6 + $0x1040] sm:$0xff]
    %v939 = vld [vmem:[#allocation6 + $0x1060] sm:$0xff]
    %v940 = vld [vmem:[#allocation6 + $0x1080] sm:$0xff]
    %v941 = vld [vmem:[#allocation6 + $0x10a0] sm:$0xff]
    %v942 = vld [vmem:[#allocation6 + $0x10c0] sm:$0xff]
    %v943 = vld [vmem:[#allocation6 + $0x10e0] sm:$0xff]
    %v944 = vld [vmem:[#allocation6 + $0x1100] sm:$0xff]
    %v945 = vld [vmem:[#allocation6 + $0x1120] sm:$0xff]
    %v946 = vld [vmem:[#allocation6 + $0x1140] sm:$0xff]
    %v947 = vld [vmem:[#allocation6 + $0x1160] sm:$0xff]
    %v948 = vld [vmem:[#allocation6 + $0x1180] sm:$0xff]
    %v949 = vld [vmem:[#allocation6 + $0x11a0] sm:$0xff]
    %v950 = vld [vmem:[#allocation6 + $0x11c0] sm:$0xff]
    %v951 = vld [vmem:[#allocation6 + $0x11e0] sm:$0xff]
    %v952 = vld [vmem:[#allocation6 + $0x1200] sm:$0xff]
    %v953 = vld [vmem:[#allocation6 + $0x1220] sm:$0xff]
    %v954 = vld [vmem:[#allocation6 + $0x1240] sm:$0xff]
    %v955 = vld [vmem:[#allocation6 + $0x1260] sm:$0xff]
    %v956 = vld [vmem:[#allocation6 + $0x1280] sm:$0xff]
    %v957 = vld [vmem:[#allocation6 + $0x12a0] sm:$0xff]
    %v958 = vld [vmem:[#allocation6 + $0x12c0] sm:$0xff]
    %v959 = vld [vmem:[#allocation6 + $0x12e0] sm:$0xff]
    %v960 = vld [vmem:[#allocation6 + $0x1300] sm:$0xff]
    %v961 = vld [vmem:[#allocation6 + $0x1320] sm:$0xff]
    %v962 = vld [vmem:[#allocation6 + $0x1340] sm:$0xff]
    %v963 = vld [vmem:[#allocation6 + $0x1360] sm:$0xff]
    %v964 = vld [vmem:[#allocation6 + $0x1380] sm:$0xff]
    %v965 = vld [vmem:[#allocation6 + $0x13a0] sm:$0xff]
    %v966 = vld [vmem:[#allocation6 + $0x13c0] sm:$0xff]
    %v967 = vld [vmem:[#allocation6 + $0x13e0] sm:$0xff]
    %v968 = vld [vmem:[#allocation6 + $0x1400] sm:$0xff]
    %v969 = vld [vmem:[#allocation6 + $0x1420] sm:$0xff]
    %v970 = vld [vmem:[#allocation6 + $0x1440] sm:$0xff]
    %v971 = vld [vmem:[#allocation6 + $0x1460] sm:$0xff]
    %v972 = vld [vmem:[#allocation6 + $0x1480] sm:$0xff]
    %v973 = vld [vmem:[#allocation6 + $0x14a0] sm:$0xff]
    %v974 = vld [vmem:[#allocation6 + $0x14c0] sm:$0xff]
    %v975 = vld [vmem:[#allocation6 + $0x14e0] sm:$0xff]
    %v976 = vld [vmem:[#allocation6 + $0x1500] sm:$0xff]
    %v977 = vld [vmem:[#allocation6 + $0x1520] sm:$0xff]
    %v978 = vld [vmem:[#allocation6 + $0x1540] sm:$0xff]
    %v979 = vld [vmem:[#allocation6 + $0x1560] sm:$0xff]
    %v980 = vld [vmem:[#allocation6 + $0x1580] sm:$0xff]
    %v981 = vld [vmem:[#allocation6 + $0x15a0] sm:$0xff]
    %v982 = vld [vmem:[#allocation6 + $0x15c0] sm:$0xff]
    %v983 = vld [vmem:[#allocation6 + $0x15e0] sm:$0xff]
    %v984 = vld [vmem:[#allocation6 + $0x1600] sm:$0xff]
    %v985 = vld [vmem:[#allocation6 + $0x1620] sm:$0xff]
    %v986 = vld [vmem:[#allocation6 + $0x1640] sm:$0xff]
    %v987 = vld [vmem:[#allocation6 + $0x1660] sm:$0xff]
    %v988 = vld [vmem:[#allocation6 + $0x1680] sm:$0xff]
    %v989 = vld [vmem:[#allocation6 + $0x16a0] sm:$0xff]
    %v990 = vld [vmem:[#allocation6 + $0x16c0] sm:$0xff]
    %v991 = vld [vmem:[#allocation6 + $0x16e0] sm:$0xff]
    %v992 = vld [vmem:[#allocation6 + $0x1700] sm:$0xff]
    %v993 = vld [vmem:[#allocation6 + $0x1720] sm:$0xff]
    %v994 = vld [vmem:[#allocation6 + $0x1740] sm:$0xff]
    %v995 = vld [vmem:[#allocation6 + $0x1760] sm:$0xff]
    %v996 = vld [vmem:[#allocation6 + $0x1780] sm:$0xff]
    %v997 = vld [vmem:[#allocation6 + $0x17a0] sm:$0xff]
    %v998 = vld [vmem:[#allocation6 + $0x17c0] sm:$0xff]
    %v999 = vld [vmem:[#allocation6 + $0x17e0] sm:$0xff]
    %v1000 = vld [vmem:[#allocation6 + $0x1800] sm:$0xff]
    %v1001 = vld [vmem:[#allocation6 + $0x1820] sm:$0xff]
    %v1002 = vld [vmem:[#allocation6 + $0x1840] sm:$0xff]
    %v1003 = vld [vmem:[#allocation6 + $0x1860] sm:$0xff]
    %v1004 = vld [vmem:[#allocation6 + $0x1880] sm:$0xff]
    %v1005 = vld [vmem:[#allocation6 + $0x1d60] sm:$0x11]
    %v1006 = vunpack.c.l.bf16 %v1005
    %v1007 = vunpack.c.h.bf16 %v1005
    %v1008 = vpack.c.bf16 %v869, %v869
    %v1009 = vpack.c.bf16 %v870, %v870
    %v1010 = vpack.c.bf16 %v871, %v871
    %v1011 = vpack.c.bf16 %v872, %v872
    %v1012 = vpack.c.bf16 %v873, %v873
    %v1013 = vpack.c.bf16 %v874, %v874
    %v1014 = vpack.c.bf16 %v875, %v875
    %v1015 = vpack.c.bf16 %v876, %v876
    %v1016 = vlaneseq
    %v1017 = vshrl.u32 %v1016, 7
    %v1018 = vsub.s32 0, %v1017
    %v1019 = vrot.slane %v1006, %v1018
    %v1020 = vlaneseq
    %v1021 = vshrl.u32 %v1020, 7
    %v1022 = vsub.s32 0, %v1021
    %v1023 = vrot.slane %v1007, %v1022
    %v1152 = vunpack.c.l.b16 %v877
    %v1153 = vunpack.c.h.b16 %v877
    %v1154 = vunpack.c.l.b16 %v878
    %v1155 = vunpack.c.h.b16 %v878
    %v1156 = vunpack.c.l.b16 %v879
    %v1157 = vunpack.c.h.b16 %v879
    %v1158 = vunpack.c.l.b16 %v880
    %v1159 = vunpack.c.h.b16 %v880
    %v1160 = vunpack.c.l.b16 %v881
    %v1161 = vunpack.c.h.b16 %v881
    %v1162 = vunpack.c.l.b16 %v882
    %v1163 = vunpack.c.h.b16 %v882
    %v1164 = vunpack.c.l.b16 %v883
    %v1165 = vunpack.c.h.b16 %v883
    %v1166 = vunpack.c.l.b16 %v884
    %v1167 = vunpack.c.h.b16 %v884
    %v1168 = vunpack.c.l.b16 %v885
    %v1169 = vunpack.c.h.b16 %v885
    %v1170 = vunpack.c.l.b16 %v886
    %v1171 = vunpack.c.h.b16 %v886
    %v1172 = vunpack.c.l.b16 %v887
    %v1173 = vunpack.c.h.b16 %v887
    %v1174 = vunpack.c.l.b16 %v888
    %v1175 = vunpack.c.h.b16 %v888
    %v1176 = vunpack.c.l.b16 %v889
    %v1177 = vunpack.c.h.b16 %v889
    %v1178 = vunpack.c.l.b16 %v890
    %v1179 = vunpack.c.h.b16 %v890
    %v1180 = vunpack.c.l.b16 %v891
    %v1181 = vunpack.c.h.b16 %v891
    %v1182 = vunpack.c.l.b16 %v892
    %v1183 = vunpack.c.h.b16 %v892
    %v1184 = vunpack.c.l.b16 %v893
    %v1185 = vunpack.c.h.b16 %v893
    %v1186 = vunpack.c.l.b16 %v894
    %v1187 = vunpack.c.h.b16 %v894
    %v1188 = vunpack.c.l.b16 %v895
    %v1189 = vunpack.c.h.b16 %v895
    %v1190 = vunpack.c.l.b16 %v896
    %v1191 = vunpack.c.h.b16 %v896
    %v1192 = vunpack.c.l.b16 %v897
    %v1193 = vunpack.c.h.b16 %v897
    %v1194 = vunpack.c.l.b16 %v898
    %v1195 = vunpack.c.h.b16 %v898
    %v1196 = vunpack.c.l.b16 %v899
    %v1197 = vunpack.c.h.b16 %v899
    %v1198 = vunpack.c.l.b16 %v900
    %v1199 = vunpack.c.h.b16 %v900
    %v1200 = vunpack.c.l.b16 %v901
    %v1201 = vunpack.c.h.b16 %v901
    %v1202 = vunpack.c.l.b16 %v902
    %v1203 = vunpack.c.h.b16 %v902
    %v1204 = vunpack.c.l.b16 %v903
    %v1205 = vunpack.c.h.b16 %v903
    %v1206 = vunpack.c.l.b16 %v904
    %v1207 = vunpack.c.h.b16 %v904
    %v1208 = vunpack.c.l.b16 %v905
    %v1209 = vunpack.c.h.b16 %v905
    %v1210 = vunpack.c.l.b16 %v906
    %v1211 = vunpack.c.h.b16 %v906
    %v1212 = vunpack.c.l.b16 %v907
    %v1213 = vunpack.c.h.b16 %v907
    %v1214 = vunpack.c.l.b16 %v908
    %v1215 = vunpack.c.h.b16 %v908
    %v1216 = vunpack.c.l.b16 %v909
    %v1217 = vunpack.c.h.b16 %v909
    %v1218 = vunpack.c.l.b16 %v910
    %v1219 = vunpack.c.h.b16 %v910
    %v1220 = vunpack.c.l.b16 %v911
    %v1221 = vunpack.c.h.b16 %v911
    %v1222 = vunpack.c.l.b16 %v912
    %v1223 = vunpack.c.h.b16 %v912
    %v1224 = vunpack.c.l.b16 %v913
    %v1225 = vunpack.c.h.b16 %v913
    %v1226 = vunpack.c.l.b16 %v914
    %v1227 = vunpack.c.h.b16 %v914
    %v1228 = vunpack.c.l.b16 %v915
    %v1229 = vunpack.c.h.b16 %v915
    %v1230 = vunpack.c.l.b16 %v916
    %v1231 = vunpack.c.h.b16 %v916
    %v1232 = vunpack.c.l.b16 %v917
    %v1233 = vunpack.c.h.b16 %v917
    %v1234 = vunpack.c.l.b16 %v918
    %v1235 = vunpack.c.h.b16 %v918
    %v1236 = vunpack.c.l.b16 %v919
    %v1237 = vunpack.c.h.b16 %v919
    %v1238 = vunpack.c.l.b16 %v920
    %v1239 = vunpack.c.h.b16 %v920
    %v1240 = vunpack.c.l.b16 %v921
    %v1241 = vunpack.c.h.b16 %v921
    %v1242 = vunpack.c.l.b16 %v922
    %v1243 = vunpack.c.h.b16 %v922
    %v1244 = vunpack.c.l.b16 %v923
    %v1245 = vunpack.c.h.b16 %v923
    %v1246 = vunpack.c.l.b16 %v924
    %v1247 = vunpack.c.h.b16 %v924
    %v1248 = vunpack.c.l.b16 %v925
    %v1249 = vunpack.c.h.b16 %v925
    %v1250 = vunpack.c.l.b16 %v926
    %v1251 = vunpack.c.h.b16 %v926
    %v1252 = vunpack.c.l.b16 %v927
    %v1253 = vunpack.c.h.b16 %v927
    %v1254 = vunpack.c.l.b16 %v928
    %v1255 = vunpack.c.h.b16 %v928
    %v1256 = vunpack.c.l.b16 %v929
    %v1257 = vunpack.c.h.b16 %v929
    %v1258 = vunpack.c.l.b16 %v930
    %v1259 = vunpack.c.h.b16 %v930
    %v1260 = vunpack.c.l.b16 %v931
    %v1261 = vunpack.c.h.b16 %v931
    %v1262 = vunpack.c.l.b16 %v932
    %v1263 = vunpack.c.h.b16 %v932
    %v1264 = vunpack.c.l.b16 %v933
    %v1265 = vunpack.c.h.b16 %v933
    %v1266 = vunpack.c.l.b16 %v934
    %v1267 = vunpack.c.h.b16 %v934
    %v1268 = vunpack.c.l.b16 %v935
    %v1269 = vunpack.c.h.b16 %v935
    %v1270 = vunpack.c.l.b16 %v936
    %v1271 = vunpack.c.h.b16 %v936
    %v1272 = vunpack.c.l.b16 %v937
    %v1273 = vunpack.c.h.b16 %v937
    %v1274 = vunpack.c.l.b16 %v938
    %v1275 = vunpack.c.h.b16 %v938
    %v1276 = vunpack.c.l.b16 %v939
    %v1277 = vunpack.c.h.b16 %v939
    %v1278 = vunpack.c.l.b16 %v940
    %v1279 = vunpack.c.h.b16 %v940
    %v1280 = vunpack.c.l.b16 %v941
    %v1281 = vunpack.c.h.b16 %v941
    %v1282 = vunpack.c.l.b16 %v942
    %v1283 = vunpack.c.h.b16 %v942
    %v1284 = vunpack.c.l.b16 %v943
    %v1285 = vunpack.c.h.b16 %v943
    %v1286 = vunpack.c.l.b16 %v944
    %v1287 = vunpack.c.h.b16 %v944
    %v1288 = vunpack.c.l.b16 %v945
    %v1289 = vunpack.c.h.b16 %v945
    %v1290 = vunpack.c.l.b16 %v946
    %v1291 = vunpack.c.h.b16 %v946
    %v1292 = vunpack.c.l.b16 %v947
    %v1293 = vunpack.c.h.b16 %v947
    %v1294 = vunpack.c.l.b16 %v948
    %v1295 = vunpack.c.h.b16 %v948
    %v1296 = vunpack.c.l.b16 %v949
    %v1297 = vunpack.c.h.b16 %v949
    %v1298 = vunpack.c.l.b16 %v950
    %v1299 = vunpack.c.h.b16 %v950
    %v1300 = vunpack.c.l.b16 %v951
    %v1301 = vunpack.c.h.b16 %v951
    %v1302 = vunpack.c.l.b16 %v952
    %v1303 = vunpack.c.h.b16 %v952
    %v1304 = vunpack.c.l.b16 %v953
    %v1305 = vunpack.c.h.b16 %v953
    %v1306 = vunpack.c.l.b16 %v954
    %v1307 = vunpack.c.h.b16 %v954
    %v1308 = vunpack.c.l.b16 %v955
    %v1309 = vunpack.c.h.b16 %v955
    %v1310 = vunpack.c.l.b16 %v956
    %v1311 = vunpack.c.h.b16 %v956
    %v1312 = vunpack.c.l.b16 %v957
    %v1313 = vunpack.c.h.b16 %v957
    %v1314 = vunpack.c.l.b16 %v958
    %v1315 = vunpack.c.h.b16 %v958
    %v1316 = vunpack.c.l.b16 %v959
    %v1317 = vunpack.c.h.b16 %v959
    %v1318 = vunpack.c.l.b16 %v960
    %v1319 = vunpack.c.h.b16 %v960
    %v1320 = vunpack.c.l.b16 %v961
    %v1321 = vunpack.c.h.b16 %v961
    %v1322 = vunpack.c.l.b16 %v962
    %v1323 = vunpack.c.h.b16 %v962
    %v1324 = vunpack.c.l.b16 %v963
    %v1325 = vunpack.c.h.b16 %v963
    %v1326 = vunpack.c.l.b16 %v964
    %v1327 = vunpack.c.h.b16 %v964
    %v1328 = vunpack.c.l.b16 %v965
    %v1329 = vunpack.c.h.b16 %v965
    %v1330 = vunpack.c.l.b16 %v966
    %v1331 = vunpack.c.h.b16 %v966
    %v1332 = vunpack.c.l.b16 %v967
    %v1333 = vunpack.c.h.b16 %v967
    %v1334 = vunpack.c.l.b16 %v968
    %v1335 = vunpack.c.h.b16 %v968
    %v1336 = vunpack.c.l.b16 %v969
    %v1337 = vunpack.c.h.b16 %v969
    %v1338 = vunpack.c.l.b16 %v970
    %v1339 = vunpack.c.h.b16 %v970
    %v1340 = vunpack.c.l.b16 %v971
    %v1341 = vunpack.c.h.b16 %v971
    %v1342 = vunpack.c.l.b16 %v972
    %v1343 = vunpack.c.h.b16 %v972
    %v1344 = vunpack.c.l.b16 %v973
    %v1345 = vunpack.c.h.b16 %v973
    %v1346 = vunpack.c.l.b16 %v974
    %v1347 = vunpack.c.h.b16 %v974
    %v1348 = vunpack.c.l.b16 %v975
    %v1349 = vunpack.c.h.b16 %v975
    %v1350 = vunpack.c.l.b16 %v976
    %v1351 = vunpack.c.h.b16 %v976
    %v1352 = vunpack.c.l.b16 %v977
    %v1353 = vunpack.c.h.b16 %v977
    %v1354 = vunpack.c.l.b16 %v978
    %v1355 = vunpack.c.h.b16 %v978
    %v1356 = vunpack.c.l.b16 %v979
    %v1357 = vunpack.c.h.b16 %v979
    %v1358 = vunpack.c.l.b16 %v980
    %v1359 = vunpack.c.h.b16 %v980
    %v1360 = vunpack.c.l.b16 %v981
    %v1361 = vunpack.c.h.b16 %v981
    %v1362 = vunpack.c.l.b16 %v982
    %v1363 = vunpack.c.h.b16 %v982
    %v1364 = vunpack.c.l.b16 %v983
    %v1365 = vunpack.c.h.b16 %v983
    %v1366 = vunpack.c.l.b16 %v984
    %v1367 = vunpack.c.h.b16 %v984
    %v1368 = vunpack.c.l.b16 %v985
    %v1369 = vunpack.c.h.b16 %v985
    %v1370 = vunpack.c.l.b16 %v986
    %v1371 = vunpack.c.h.b16 %v986
    %v1372 = vunpack.c.l.b16 %v987
    %v1373 = vunpack.c.h.b16 %v987
    %v1374 = vunpack.c.l.b16 %v988
    %v1375 = vunpack.c.h.b16 %v988
    %v1376 = vunpack.c.l.b16 %v989
    %v1377 = vunpack.c.h.b16 %v989
    %v1378 = vunpack.c.l.b16 %v990
    %v1379 = vunpack.c.h.b16 %v990
    %v1380 = vunpack.c.l.b16 %v991
    %v1381 = vunpack.c.h.b16 %v991
    %v1382 = vunpack.c.l.b16 %v992
    %v1383 = vunpack.c.h.b16 %v992
    %v1384 = vunpack.c.l.b16 %v993
    %v1385 = vunpack.c.h.b16 %v993
    %v1386 = vunpack.c.l.b16 %v994
    %v1387 = vunpack.c.h.b16 %v994
    %v1388 = vunpack.c.l.b16 %v995
    %v1389 = vunpack.c.h.b16 %v995
    %v1390 = vunpack.c.l.b16 %v996
    %v1391 = vunpack.c.h.b16 %v996
    %v1392 = vunpack.c.l.b16 %v997
    %v1393 = vunpack.c.h.b16 %v997
    %v1394 = vunpack.c.l.b16 %v998
    %v1395 = vunpack.c.h.b16 %v998
    %v1396 = vunpack.c.l.b16 %v999
    %v1397 = vunpack.c.h.b16 %v999
    %v1398 = vunpack.c.l.b16 %v1000
    %v1399 = vunpack.c.h.b16 %v1000
    %v1400 = vunpack.c.l.b16 %v1001
    %v1401 = vunpack.c.h.b16 %v1001
    %v1402 = vunpack.c.l.b16 %v1002
    %v1403 = vunpack.c.h.b16 %v1002
    %v1404 = vunpack.c.l.b16 %v1003
    %v1405 = vunpack.c.h.b16 %v1003
    %v1406 = vunpack.c.l.b16 %v1004
    %v1407 = vunpack.c.h.b16 %v1004
    %v1408 = vpack.c.b16 %v1154, %v1152
    %v1409 = vpack.c.b16 %v1155, %v1153
    %v1410 = vpack.c.b16 %v1158, %v1156
    %v1411 = vpack.c.b16 %v1159, %v1157
    %v1412 = vpack.c.b16 %v1162, %v1160
    %v1413 = vpack.c.b16 %v1163, %v1161
    %v1414 = vpack.c.b16 %v1166, %v1164
    %v1415 = vpack.c.b16 %v1167, %v1165
    %v1416 = vpack.c.b16 %v1170, %v1168
    %v1417 = vpack.c.b16 %v1171, %v1169
    %v1418 = vpack.c.b16 %v1174, %v1172
    %v1419 = vpack.c.b16 %v1175, %v1173
    %v1420 = vpack.c.b16 %v1178, %v1176
    %v1421 = vpack.c.b16 %v1179, %v1177
    %v1422 = vpack.c.b16 %v1182, %v1180
    %v1423 = vpack.c.b16 %v1183, %v1181
    %v1424 = vpack.c.b16 %v1186, %v1184
    %v1425 = vpack.c.b16 %v1187, %v1185
    %v1426 = vpack.c.b16 %v1190, %v1188
    %v1427 = vpack.c.b16 %v1191, %v1189
    %v1428 = vpack.c.b16 %v1194, %v1192
    %v1429 = vpack.c.b16 %v1195, %v1193
    %v1430 = vpack.c.b16 %v1198, %v1196
    %v1431 = vpack.c.b16 %v1199, %v1197
    %v1432 = vpack.c.b16 %v1202, %v1200
    %v1433 = vpack.c.b16 %v1203, %v1201
    %v1434 = vpack.c.b16 %v1206, %v1204
    %v1435 = vpack.c.b16 %v1207, %v1205
    %v1436 = vpack.c.b16 %v1210, %v1208
    %v1437 = vpack.c.b16 %v1211, %v1209
    %v1438 = vpack.c.b16 %v1214, %v1212
    %v1439 = vpack.c.b16 %v1215, %v1213
    %v1440 = vpack.c.b16 %v1218, %v1216
    %v1441 = vpack.c.b16 %v1219, %v1217
    %v1442 = vpack.c.b16 %v1222, %v1220
    %v1443 = vpack.c.b16 %v1223, %v1221
    %v1444 = vpack.c.b16 %v1226, %v1224
    %v1445 = vpack.c.b16 %v1227, %v1225
    %v1446 = vpack.c.b16 %v1230, %v1228
    %v1447 = vpack.c.b16 %v1231, %v1229
    %v1448 = vpack.c.b16 %v1234, %v1232
    %v1449 = vpack.c.b16 %v1235, %v1233
    %v1450 = vpack.c.b16 %v1238, %v1236
    %v1451 = vpack.c.b16 %v1239, %v1237
    %v1452 = vpack.c.b16 %v1242, %v1240
    %v1453 = vpack.c.b16 %v1243, %v1241
    %v1454 = vpack.c.b16 %v1246, %v1244
    %v1455 = vpack.c.b16 %v1247, %v1245
    %v1456 = vpack.c.b16 %v1250, %v1248
    %v1457 = vpack.c.b16 %v1251, %v1249
    %v1458 = vpack.c.b16 %v1254, %v1252
    %v1459 = vpack.c.b16 %v1255, %v1253
    %v1460 = vpack.c.b16 %v1258, %v1256
    %v1461 = vpack.c.b16 %v1259, %v1257
    %v1462 = vpack.c.b16 %v1262, %v1260
    %v1463 = vpack.c.b16 %v1263, %v1261
    %v1464 = vpack.c.b16 %v1266, %v1264
    %v1465 = vpack.c.b16 %v1267, %v1265
    %v1466 = vpack.c.b16 %v1270, %v1268
    %v1467 = vpack.c.b16 %v1271, %v1269
    %v1468 = vpack.c.b16 %v1274, %v1272
    %v1469 = vpack.c.b16 %v1275, %v1273
    %v1470 = vpack.c.b16 %v1278, %v1276
    %v1471 = vpack.c.b16 %v1279, %v1277
    %v1472 = vpack.c.b16 %v1282, %v1280
    %v1473 = vpack.c.b16 %v1283, %v1281
    %v1474 = vpack.c.b16 %v1286, %v1284
    %v1475 = vpack.c.b16 %v1287, %v1285
    %v1476 = vpack.c.b16 %v1290, %v1288
    %v1477 = vpack.c.b16 %v1291, %v1289
    %v1478 = vpack.c.b16 %v1294, %v1292
    %v1479 = vpack.c.b16 %v1295, %v1293
    %v1480 = vpack.c.b16 %v1298, %v1296
    %v1481 = vpack.c.b16 %v1299, %v1297
    %v1482 = vpack.c.b16 %v1302, %v1300
    %v1483 = vpack.c.b16 %v1303, %v1301
    %v1484 = vpack.c.b16 %v1306, %v1304
    %v1485 = vpack.c.b16 %v1307, %v1305
    %v1486 = vpack.c.b16 %v1310, %v1308
    %v1487 = vpack.c.b16 %v1311, %v1309
    %v1488 = vpack.c.b16 %v1314, %v1312
    %v1489 = vpack.c.b16 %v1315, %v1313
    %v1490 = vpack.c.b16 %v1318, %v1316
    %v1491 = vpack.c.b16 %v1319, %v1317
    %v1492 = vpack.c.b16 %v1322, %v1320
    %v1493 = vpack.c.b16 %v1323, %v1321
    %v1494 = vpack.c.b16 %v1326, %v1324
    %v1495 = vpack.c.b16 %v1327, %v1325
    %v1496 = vpack.c.b16 %v1330, %v1328
    %v1497 = vpack.c.b16 %v1331, %v1329
    %v1498 = vpack.c.b16 %v1334, %v1332
    %v1499 = vpack.c.b16 %v1335, %v1333
    %v1500 = vpack.c.b16 %v1338, %v1336
    %v1501 = vpack.c.b16 %v1339, %v1337
    %v1502 = vpack.c.b16 %v1342, %v1340
    %v1503 = vpack.c.b16 %v1343, %v1341
    %v1504 = vpack.c.b16 %v1346, %v1344
    %v1505 = vpack.c.b16 %v1347, %v1345
    %v1506 = vpack.c.b16 %v1350, %v1348
    %v1507 = vpack.c.b16 %v1351, %v1349
    %v1508 = vpack.c.b16 %v1354, %v1352
    %v1509 = vpack.c.b16 %v1355, %v1353
    %v1510 = vpack.c.b16 %v1358, %v1356
    %v1511 = vpack.c.b16 %v1359, %v1357
    %v1512 = vpack.c.b16 %v1362, %v1360
    %v1513 = vpack.c.b16 %v1363, %v1361
    %v1514 = vpack.c.b16 %v1366, %v1364
    %v1515 = vpack.c.b16 %v1367, %v1365
    %v1516 = vpack.c.b16 %v1370, %v1368
    %v1517 = vpack.c.b16 %v1371, %v1369
    %v1518 = vpack.c.b16 %v1374, %v1372
    %v1519 = vpack.c.b16 %v1375, %v1373
    %v1520 = vpack.c.b16 %v1378, %v1376
    %v1521 = vpack.c.b16 %v1379, %v1377
    %v1522 = vpack.c.b16 %v1382, %v1380
    %v1523 = vpack.c.b16 %v1383, %v1381
    %v1524 = vpack.c.b16 %v1386, %v1384
    %v1525 = vpack.c.b16 %v1387, %v1385
    %v1526 = vpack.c.b16 %v1390, %v1388
    %v1527 = vpack.c.b16 %v1391, %v1389
    %v1528 = vpack.c.b16 %v1394, %v1392
    %v1529 = vpack.c.b16 %v1395, %v1393
    %v1530 = vpack.c.b16 %v1398, %v1396
    %v1531 = vpack.c.b16 %v1399, %v1397
    %v1532 = vpack.c.b16 %v1402, %v1400
    %v1533 = vpack.c.b16 %v1403, %v1401
    %v1534 = vpack.c.b16 %v1406, %v1404
    %v1535 = vpack.c.b16 %v1407, %v1405
    %1664 = vmatprep.subr.bf16.mxu0 %v1409
    %1665 = vmatpush1.bf16.msra.mxu0 %v1408
    %1666 = vmatprep.subr.bf16.mxu0 %v1411
    %1667 = vmatpush1.bf16.msra.mxu0 %v1410
    %1668 = vmatprep.subr.bf16.mxu0 %v1413
    %1669 = vmatpush1.bf16.msra.mxu0 %v1412
    %1670 = vmatprep.subr.bf16.mxu0 %v1415
    %1671 = vmatpush1.bf16.msra.mxu0 %v1414
    %1672 = vmatprep.subr.bf16.mxu0 %v1417
    %1673 = vmatpush1.bf16.msra.mxu0 %v1416
    %1674 = vmatprep.subr.bf16.mxu0 %v1419
    %1675 = vmatpush1.bf16.msra.mxu0 %v1418
    %1676 = vmatprep.subr.bf16.mxu0 %v1421
    %1677 = vmatpush1.bf16.msra.mxu0 %v1420
    %1678 = vmatprep.subr.bf16.mxu0 %v1423
    %1679 = vmatpush1.bf16.msra.mxu0 %v1422
    %1680 = vmatprep.subr.bf16.mxu0 %v1425
    %1681 = vmatpush1.bf16.msra.mxu0 %v1424
    %1682 = vmatprep.subr.bf16.mxu0 %v1427
    %1683 = vmatpush1.bf16.msra.mxu0 %v1426
    %1684 = vmatprep.subr.bf16.mxu0 %v1429
    %1685 = vmatpush1.bf16.msra.mxu0 %v1428
    %1686 = vmatprep.subr.bf16.mxu0 %v1431
    %1687 = vmatpush1.bf16.msra.mxu0 %v1430
    %1688 = vmatprep.subr.bf16.mxu0 %v1433
    %1689 = vmatpush1.bf16.msra.mxu0 %v1432
    %1690 = vmatprep.subr.bf16.mxu0 %v1435
    %1691 = vmatpush1.bf16.msra.mxu0 %v1434
    %1692 = vmatprep.subr.bf16.mxu0 %v1437
    %1693 = vmatpush1.bf16.msra.mxu0 %v1436
    %1694 = vmatprep.subr.bf16.mxu0 %v1439
    %1695 = vmatpush1.bf16.msra.mxu0 %v1438
    %1696 = vmatprep.mubr.bf16.mxu0 %v1009
    %1697 = vmatmul.mubr.bf16.gmra.mrb[0].mxu0 %v1008
    %v1698 = vpop.f32.mrb[0].mxu0
    %v1699 = vadd.f32 %v1019, %v1698
    %v1700 = vpop.f32.mrb[0].mxu0
    %v1701 = vadd.f32 %v1023, %v1700
    %v1702 = vpop.f32.mrb[0].mxu0
    %v1703 = vpop.f32.mrb[0].mxu0
    %1704 = vdwg.mxu0
    %1705 = vmatprep.subr.bf16.mxu0 %v1441
    %1706 = vmatpush1.bf16.msra.mxu0 %v1440
    %1707 = vmatprep.subr.bf16.mxu0 %v1443
    %1708 = vmatpush1.bf16.msra.mxu0 %v1442
    %1709 = vmatprep.subr.bf16.mxu0 %v1445
    %1710 = vmatpush1.bf16.msra.mxu0 %v1444
    %1711 = vmatprep.subr.bf16.mxu0 %v1447
    %1712 = vmatpush1.bf16.msra.mxu0 %v1446
    %1713 = vmatprep.subr.bf16.mxu0 %v1449
    %1714 = vmatpush1.bf16.msra.mxu0 %v1448
    %1715 = vmatprep.subr.bf16.mxu0 %v1451
    %1716 = vmatpush1.bf16.msra.mxu0 %v1450
    %1717 = vmatprep.subr.bf16.mxu0 %v1453
    %1718 = vmatpush1.bf16.msra.mxu0 %v1452
    %1719 = vmatprep.subr.bf16.mxu0 %v1455
    %1720 = vmatpush1.bf16.msra.mxu0 %v1454
    %1721 = vmatprep.subr.bf16.mxu0 %v1457
    %1722 = vmatpush1.bf16.msra.mxu0 %v1456
    %1723 = vmatprep.subr.bf16.mxu0 %v1459
    %1724 = vmatpush1.bf16.msra.mxu0 %v1458
    %1725 = vmatprep.subr.bf16.mxu0 %v1461
    %1726 = vmatpush1.bf16.msra.mxu0 %v1460
    %1727 = vmatprep.subr.bf16.mxu0 %v1463
    %1728 = vmatpush1.bf16.msra.mxu0 %v1462
    %1729 = vmatprep.subr.bf16.mxu0 %v1465
    %1730 = vmatpush1.bf16.msra.mxu0 %v1464
    %1731 = vmatprep.subr.bf16.mxu0 %v1467
    %1732 = vmatpush1.bf16.msra.mxu0 %v1466
    %1733 = vmatprep.subr.bf16.mxu0 %v1469
    %1734 = vmatpush1.bf16.msra.mxu0 %v1468
    %1735 = vmatprep.subr.bf16.mxu0 %v1471
    %1736 = vmatpush1.bf16.msra.mxu0 %v1470
    %1737 = vmatprep.mubr.bf16.mxu0 %v1011
    %1738 = vmatmul.mubr.bf16.gmra.mrb[0].mxu0 %v1010
    %v1739 = vpop.f32.mrb[0].mxu0
    %v1740 = vadd.f32 %v1699, %v1739
    %v1741 = vpop.f32.mrb[0].mxu0
    %v1742 = vadd.f32 %v1701, %v1741
    %v1743 = vpop.f32.mrb[0].mxu0
    %v1744 = vpop.f32.mrb[0].mxu0
    %1745 = vdwg.mxu0
    %1746 = vmatprep.subr.bf16.mxu0 %v1473
    %1747 = vmatpush1.bf16.msra.mxu0 %v1472
    %1748 = vmatprep.subr.bf16.mxu0 %v1475
    %1749 = vmatpush1.bf16.msra.mxu0 %v1474
    %1750 = vmatprep.subr.bf16.mxu0 %v1477
    %1751 = vmatpush1.bf16.msra.mxu0 %v1476
    %1752 = vmatprep.subr.bf16.mxu0 %v1479
    %1753 = vmatpush1.bf16.msra.mxu0 %v1478
    %1754 = vmatprep.subr.bf16.mxu0 %v1481
    %1755 = vmatpush1.bf16.msra.mxu0 %v1480
    %1756 = vmatprep.subr.bf16.mxu0 %v1483
    %1757 = vmatpush1.bf16.msra.mxu0 %v1482
    %1758 = vmatprep.subr.bf16.mxu0 %v1485
    %1759 = vmatpush1.bf16.msra.mxu0 %v1484
    %1760 = vmatprep.subr.bf16.mxu0 %v1487
    %1761 = vmatpush1.bf16.msra.mxu0 %v1486
    %1762 = vmatprep.subr.bf16.mxu0 %v1489
    %1763 = vmatpush1.bf16.msra.mxu0 %v1488
    %1764 = vmatprep.subr.bf16.mxu0 %v1491
    %1765 = vmatpush1.bf16.msra.mxu0 %v1490
    %1766 = vmatprep.subr.bf16.mxu0 %v1493
    %1767 = vmatpush1.bf16.msra.mxu0 %v1492
    %1768 = vmatprep.subr.bf16.mxu0 %v1495
    %1769 = vmatpush1.bf16.msra.mxu0 %v1494
    %1770 = vmatprep.subr.bf16.mxu0 %v1497
    %1771 = vmatpush1.bf16.msra.mxu0 %v1496
    %1772 = vmatprep.subr.bf16.mxu0 %v1499
    %1773 = vmatpush1.bf16.msra.mxu0 %v1498
    %1774 = vmatprep.subr.bf16.mxu0 %v1501
    %1775 = vmatpush1.bf16.msra.mxu0 %v1500
    %1776 = vmatprep.subr.bf16.mxu0 %v1503
    %1777 = vmatpush1.bf16.msra.mxu0 %v1502
    %1778 = vmatprep.mubr.bf16.mxu0 %v1013
    %1779 = vmatmul.mubr.bf16.gmra.mrb[0].mxu0 %v1012
    %v1780 = vpop.f32.mrb[0].mxu0
    %v1781 = vadd.f32 %v1740, %v1780
    %v1782 = vpop.f32.mrb[0].mxu0
    %v1783 = vadd.f32 %v1742, %v1782
    %v1784 = vpop.f32.mrb[0].mxu0
    %v1785 = vpop.f32.mrb[0].mxu0
    %1786 = vdwg.mxu0
    %1787 = vmatprep.subr.bf16.mxu0 %v1505
    %1788 = vmatpush1.bf16.msra.mxu0 %v1504
    %1789 = vmatprep.subr.bf16.mxu0 %v1507
    %1790 = vmatpush1.bf16.msra.mxu0 %v1506
    %1791 = vmatprep.subr.bf16.mxu0 %v1509
    %1792 = vmatpush1.bf16.msra.mxu0 %v1508
    %1793 = vmatprep.subr.bf16.mxu0 %v1511
    %1794 = vmatpush1.bf16.msra.mxu0 %v1510
    %1795 = vmatprep.subr.bf16.mxu0 %v1513
    %1796 = vmatpush1.bf16.msra.mxu0 %v1512
    %1797 = vmatprep.subr.bf16.mxu0 %v1515
    %1798 = vmatpush1.bf16.msra.mxu0 %v1514
    %1799 = vmatprep.subr.bf16.mxu0 %v1517
    %1800 = vmatpush1.bf16.msra.mxu0 %v1516
    %1801 = vmatprep.subr.bf16.mxu0 %v1519
    %1802 = vmatpush1.bf16.msra.mxu0 %v1518
    %1803 = vmatprep.subr.bf16.mxu0 %v1521
    %1804 = vmatpush1.bf16.msra.mxu0 %v1520
    %1805 = vmatprep.subr.bf16.mxu0 %v1523
    %1806 = vmatpush1.bf16.msra.mxu0 %v1522
    %1807 = vmatprep.subr.bf16.mxu0 %v1525
    %1808 = vmatpush1.bf16.msra.mxu0 %v1524
    %1809 = vmatprep.subr.bf16.mxu0 %v1527
    %1810 = vmatpush1.bf16.msra.mxu0 %v1526
    %1811 = vmatprep.subr.bf16.mxu0 %v1529
    %1812 = vmatpush1.bf16.msra.mxu0 %v1528
    %1813 = vmatprep.subr.bf16.mxu0 %v1531
    %1814 = vmatpush1.bf16.msra.mxu0 %v1530
    %1815 = vmatprep.subr.bf16.mxu0 %v1533
    %1816 = vmatpush1.bf16.msra.mxu0 %v1532
    %1817 = vmatprep.subr.bf16.mxu0 %v1535
    %1818 = vmatpush1.bf16.msra.mxu0 %v1534
    %1819 = vmatprep.mubr.bf16.mxu0 %v1015
    %1820 = vmatmul.mubr.bf16.gmra.mrb[0].mxu0 %v1014
    %v1821 = vpop.f32.mrb[0].mxu0
    %v1822 = vadd.f32 %v1781, %v1821
    %v1823 = vpop.f32.mrb[0].mxu0
    %v1824 = vadd.f32 %v1783, %v1823
    %v1825 = vpop.f32.mrb[0].mxu0
    %v1826 = vpop.f32.mrb[0].mxu0
    %1827 = vdwg.mxu0
    %vm1828 = vcmp.gt.f32.partialorder %v1822, 0.0
    %vm1829 = vcmp.gt.f32.partialorder %v1824, 0.0
    %v1830 = vmul.f32 %v1822, 0.01
    %v1831 = vmul.f32 %v1824, 0.01
    %v1832 = vsel %vm1828, %v1822, %v1830
    %v1833 = vsel %vm1829, %v1824, %v1831
    %v1834 = vld [vmem:[#allocation6 + $0x18a0] sm:$0xf]
    %v1835 = vld [vmem:[#allocation6 + $0x18c0] sm:$0xf]
    %v1836 = vld [vmem:[#allocation6 + $0x18e0] sm:$0xf]
    %v1837 = vld [vmem:[#allocation6 + $0x1900] sm:$0xf]
    %v1838 = vld [vmem:[#allocation6 + $0x1920] sm:$0xf]
    %v1839 = vld [vmem:[#allocation6 + $0x1940] sm:$0xf]
    %v1840 = vld [vmem:[#allocation6 + $0x1960] sm:$0xf]
    %v1841 = vld [vmem:[#allocation6 + $0x1980] sm:$0xf]
    %v1842 = vld [vmem:[#allocation6 + $0x19a0] sm:$0xf]
    %v1843 = vld [vmem:[#allocation6 + $0x19c0] sm:$0xf]
    %v1844 = vld [vmem:[#allocation6 + $0x19e0] sm:$0xf]
    %v1845 = vld [vmem:[#allocation6 + $0x1a00] sm:$0xf]
    %v1846 = vld [vmem:[#allocation6 + $0x1a20] sm:$0xf]
    %v1847 = vld [vmem:[#allocation6 + $0x1a40] sm:$0xf]
    %v1848 = vld [vmem:[#allocation6 + $0x1a60] sm:$0xf]
    %v1849 = vld [vmem:[#allocation6 + $0x1a80] sm:$0xf]
    %v1850 = vld [vmem:[#allocation6 + $0x1aa0] sm:$0xf]
    %v1851 = vld [vmem:[#allocation6 + $0x1ac0] sm:$0xf]
    %v1852 = vld [vmem:[#allocation6 + $0x1ae0] sm:$0xf]
    %v1853 = vld [vmem:[#allocation6 + $0x1b00] sm:$0xf]
    %v1854 = vld [vmem:[#allocation6 + $0x1b20] sm:$0xf]
    %v1855 = vld [vmem:[#allocation6 + $0x1b40] sm:$0xf]
    %v1856 = vld [vmem:[#allocation6 + $0x1b60] sm:$0xf]
    %v1857 = vld [vmem:[#allocation6 + $0x1b80] sm:$0xf]
    %v1858 = vld [vmem:[#allocation6 + $0x1ba0] sm:$0xf]
    %v1859 = vld [vmem:[#allocation6 + $0x1bc0] sm:$0xf]
    %v1860 = vld [vmem:[#allocation6 + $0x1be0] sm:$0xf]
    %v1861 = vld [vmem:[#allocation6 + $0x1c00] sm:$0xf]
    %v1862 = vld [vmem:[#allocation6 + $0x1c20] sm:$0xf]
    %v1863 = vld [vmem:[#allocation6 + $0x1c40] sm:$0xf]
    %v1864 = vld [vmem:[#allocation6 + $0x1c60] sm:$0xf]
    %v1865 = vld [vmem:[#allocation6 + $0x1c80] sm:$0xf]
    %v1866 = vld [vmem:[#allocation6 + $0x1d80] sm:$0x1]
    %v1867 = vunpack.c.l.bf16 %v1866
    %v1868 = vpack.c.bf16 %v1832, %v1832
    %v1869 = vpack.c.bf16 %v1833, %v1833
    %v1870 = vlaneseq
    %v1871 = vshrl.u32 %v1870, 7
    %v1872 = vsub.s32 0, %v1871
    %v1873 = vrot.slane %v1867, %v1872
    %v1906 = vunpack.c.l.b16 %v1834
    %v1907 = vunpack.c.l.b16 %v1835
    %v1908 = vunpack.c.l.b16 %v1836
    %v1909 = vunpack.c.l.b16 %v1837
    %v1910 = vunpack.c.l.b16 %v1838
    %v1911 = vunpack.c.l.b16 %v1839
    %v1912 = vunpack.c.l.b16 %v1840
    %v1913 = vunpack.c.l.b16 %v1841
    %v1914 = vunpack.c.l.b16 %v1842
    %v1915 = vunpack.c.l.b16 %v1843
    %v1916 = vunpack.c.l.b16 %v1844
    %v1917 = vunpack.c.l.b16 %v1845
    %v1918 = vunpack.c.l.b16 %v1846
    %v1919 = vunpack.c.l.b16 %v1847
    %v1920 = vunpack.c.l.b16 %v1848
    %v1921 = vunpack.c.l.b16 %v1849
    %v1922 = vunpack.c.l.b16 %v1850
    %v1923 = vunpack.c.l.b16 %v1851
    %v1924 = vunpack.c.l.b16 %v1852
    %v1925 = vunpack.c.l.b16 %v1853
    %v1926 = vunpack.c.l.b16 %v1854
    %v1927 = vunpack.c.l.b16 %v1855
    %v1928 = vunpack.c.l.b16 %v1856
    %v1929 = vunpack.c.l.b16 %v1857
    %v1930 = vunpack.c.l.b16 %v1858
    %v1931 = vunpack.c.l.b16 %v1859
    %v1932 = vunpack.c.l.b16 %v1860
    %v1933 = vunpack.c.l.b16 %v1861
    %v1934 = vunpack.c.l.b16 %v1862
    %v1935 = vunpack.c.l.b16 %v1863
    %v1936 = vunpack.c.l.b16 %v1864
    %v1937 = vunpack.c.l.b16 %v1865
    %v1938 = vpack.c.b16 %v1907, %v1906
    %v1939 = vpack.c.b16 %v1909, %v1908
    %v1940 = vpack.c.b16 %v1911, %v1910
    %v1941 = vpack.c.b16 %v1913, %v1912
    %v1942 = vpack.c.b16 %v1915, %v1914
    %v1943 = vpack.c.b16 %v1917, %v1916
    %v1944 = vpack.c.b16 %v1919, %v1918
    %v1945 = vpack.c.b16 %v1921, %v1920
    %v1946 = vpack.c.b16 %v1923, %v1922
    %v1947 = vpack.c.b16 %v1925, %v1924
    %v1948 = vpack.c.b16 %v1927, %v1926
    %v1949 = vpack.c.b16 %v1929, %v1928
    %v1950 = vpack.c.b16 %v1931, %v1930
    %v1951 = vpack.c.b16 %v1933, %v1932
    %v1952 = vpack.c.b16 %v1935, %v1934
    %v1953 = vpack.c.b16 %v1937, %v1936
    %1970 = vmatprep.subr.bf16.mxu0 0
    %1971 = vmatpush1.bf16.msra.mxu0 %v1938
    %1972 = vmatprep.subr.bf16.mxu0 0
    %1973 = vmatpush1.bf16.msra.mxu0 %v1939
    %1974 = vmatprep.subr.bf16.mxu0 0
    %1975 = vmatpush1.bf16.msra.mxu0 %v1940
    %1976 = vmatprep.subr.bf16.mxu0 0
    %1977 = vmatpush1.bf16.msra.mxu0 %v1941
    %1978 = vmatprep.subr.bf16.mxu0 0
    %1979 = vmatpush1.bf16.msra.mxu0 %v1942
    %1980 = vmatprep.subr.bf16.mxu0 0
    %1981 = vmatpush1.bf16.msra.mxu0 %v1943
    %1982 = vmatprep.subr.bf16.mxu0 0
    %1983 = vmatpush1.bf16.msra.mxu0 %v1944
    %1984 = vmatprep.subr.bf16.mxu0 0
    %1985 = vmatpush1.bf16.msra.mxu0 %v1945
    %1986 = vmatprep.subr.bf16.mxu0 0
    %1987 = vmatpush1.bf16.msra.mxu0 %v1946
    %1988 = vmatprep.subr.bf16.mxu0 0
    %1989 = vmatpush1.bf16.msra.mxu0 %v1947
    %1990 = vmatprep.subr.bf16.mxu0 0
    %1991 = vmatpush1.bf16.msra.mxu0 %v1948
    %1992 = vmatprep.subr.bf16.mxu0 0
    %1993 = vmatpush1.bf16.msra.mxu0 %v1949
    %1994 = vmatprep.subr.bf16.mxu0 0
    %1995 = vmatpush1.bf16.msra.mxu0 %v1950
    %1996 = vmatprep.subr.bf16.mxu0 0
    %1997 = vmatpush1.bf16.msra.mxu0 %v1951
    %1998 = vmatprep.subr.bf16.mxu0 0
    %1999 = vmatpush1.bf16.msra.mxu0 %v1952
    %2000 = vmatprep.subr.bf16.mxu0 0
    %2001 = vmatpush1.bf16.msra.mxu0 %v1953
    %2002 = vmatprep.mubr.bf16.mxu0 %v1869
    %2003 = vmatmul.mubr.bf16.gmra.mrb[0].mxu0 %v1868
    %v2004 = vpop.f32.mrb[0].mxu0
    %v2005 = vadd.f32 %v1873, %v2004
    %v2006 = vpop.f32.mrb[0].mxu0
    %v2007 = vpop.f32.mrb[0].mxu0
    %v2008 = vpop.f32.mrb[0].mxu0
    %2009 = vdwg.mxu0
    %vm2010 = vcmp.gt.f32.partialorder %v2005, 0.0
    %v2011 = vmul.f32 %v2005, 0.01
    %v2012 = vsel %vm2010, %v2005, %v2011
    %v2013 = vld [vmem:[#allocation6 + $0x1ca0] sm:$0x1]
    %v2014 = vunpack.c.l.bf16 %v2013
    %v2015 = vld [vmem:[#allocation6 + $0x1da0] sm:$0x1]
    %v2016 = vunpack.c.l.bf16 %v2015
    %v2017 = vlaneseq
    %v2018 = vshrl.u32 %v2017, 7
    %v2019 = vsub.s32 0, %v2018
    %v2020 = vrot.slane %v2014, %v2019
    %v2021 = vmul.f32 %v2012, %v2020
    %vm2022 = vcmask 130048
    %v2023 = vsel %vm2022, %v2021, 0.0
    %2024 = vadd.xlane.f32.xlu0 %v2023
    %v2025 = vpop.xlane.xlu0 %2024
    %v2026 = vlaneseq
    %v2027 = vshrl.u32 %v2026, 7
    %v2028 = vsub.s32 0, %v2027
    %v2029 = vrot.slane %v2016, %v2028
    %v2030 = vadd.f32 %v2025, %v2029
    %vm2031 = vcmask 7168
    %2032 = vst.msk [vmem:[%s3] sm:$0xff] %vm2031, %v2030
    // Predicated region
    $region18: #{tpu_custom_call.1} parent=1 // pred_check
      _
    $region19: #{tpu_custom_call.1} parent=1 // pred_check_branch
      %2034 = sbr.rel (0) target = $region21
    $region20: #{tpu_custom_call.1} parent=1 // pred_region
      _
    $region21: #{tpu_custom_call.1} parent=1 // pred_fallthru
      _
    // Predicated region
    $region22: #{tpu_custom_call.1} parent=1 // pred_check
      _
    $region23: #{tpu_custom_call.1} parent=1 // pred_check_branch
      %2036 = sbr.rel (0) target = $region25
    $region24: #{tpu_custom_call.1} parent=1 // pred_region
      _
    $region25: #{tpu_custom_call.1} parent=1 // pred_fallthru
      _
    %2037 = vsyncpa [#allocation5], 1
    %2038 = vsyncpa [#allocation7], 1

</llo_original>
